<compile_context>
chip_gen: v5e
topology: v5e:2x2
jax: 0.10.0
libtpu: 0.0.40
codegen_flags: <defaults>
</compile_context>

<pallas_src>
import jax
import jax.numpy as jnp
import numpy as np
from jax.experimental import pallas as pl
from jax.experimental.pallas import tpu as pltpu


def _round_up(x, m):
    return (x + m - 1) // m * m


def _vmem_capacity_bytes():
    """Per-core VMEM capacity; conservative 64 MiB fallback (v7x per TC)."""
    try:
        info = pltpu.get_tpu_info()
    except Exception:
        return 64 * 2**20
    for name in ("vmem_capacity_bytes", "vmem_bytes", "vmem_size_bytes"):
        v = getattr(info, name, None)
        if v:
            try:
                return int(v)
            except Exception:
                pass
    return 64 * 2**20


def _kernel_vmem_bytes(tn, to, kc, d2, out_itemsize, mxu_itemsize=2):
    """Per-grid-step VMEM footprint of the actual pipeline (bf16 operands)."""
    x1 = 2 * tn * kc * mxu_itemsize            # double-buffered x1 D1-chunk
    x2 = 2 * tn * d2 * mxu_itemsize            # double-buffered x2 rows
    w = 2 * kc * d2 * to * mxu_itemsize        # double-buffered W_mat block
    rb = 2 * tn * to * 4                       # double-buffered row bias (f32)
    out = 2 * tn * to * out_itemsize           # double-buffered output tile
    phi = tn * kc * d2 * mxu_itemsize          # phi scratch (single)
    acc = tn * to * 4                          # f32 accumulator scratch
    return x1 + x2 + w + rb + out + phi + acc


def _biaffine_kernel(x1_ref, x2_ref, w_ref, rbias_ref, out_ref, phi_ref, acc_ref):
    # x1_ref   : (TN, KC)      bf16  D1-chunk of input1 rows
    # x2_ref   : (TN, D2)      bf16  full input2 rows (reused across O / D1 chunks)
    # w_ref    : (KC*D2, TO)   bf16  W_mat rows for this (D1-chunk, O-tile)
    # rbias_ref: (TN, TO)      f32   per-row bias (linear + constant terms)
    # out_ref  : (TN, TO)            lane-dense output tile
    # phi_ref  : (TN, KC*D2)   bf16  VMEM scratch: outer-product features
    # acc_ref  : (TN, TO)      f32   VMEM scratch: matmul accumulator
    k = pl.program_id(2)

    @pl.when(k == 0)
    def _init():
        acc_ref[...] = jnp.zeros_like(acc_ref)

    kc = x1_ref.shape[-1]
    d2 = x2_ref.shape[-1]
    x1 = x1_ref[...]
    x2 = x2_ref[...]
    # Build the outer-product features for this D1 chunk with a short static
    # loop (kc <= 128) of per-column lane broadcasts: no concatenate, no
    # selector, no relayout.  Padded x1 columns are zero -> contribute zero.
    for r in range(kc):
        phi_ref[:, r * d2:(r + 1) * d2] = x1[:, r:r + 1] * x2

    # One deep-K MXU matmul, bf16 operands, f32 accumulation.
    acc_ref[...] += jnp.dot(phi_ref[...], w_ref[...],
                            preferred_element_type=jnp.float32)

    @pl.when(k == pl.num_programs(2) - 1)
    def _finalize():
        out_ref[...] = (acc_ref[...] + rbias_ref[...]).astype(out_ref.dtype)


def biaffine_reference(input1, input2, W, b):
    """Pure-JAX reference matching the PyTorch module."""
    ones1 = jnp.ones(input1.shape[:-1] + (1,), input1.dtype)
    ones2 = jnp.ones(input2.shape[:-1] + (1,), input2.dtype)
    x1 = jnp.concatenate([input1, ones1], axis=-1)
    x2 = jnp.concatenate([input2, ones2], axis=-1)
    return jnp.einsum("...i,oij,...j->...o", x1, W, x2,
                      precision=jax.lax.Precision.HIGHEST) + b


def biaffine_scorer(input1, input2, W, b, *, use_pallas=None):
    """Pallas TPU forward of BiaffineScorer.

    input1: (..., D1), input2: (..., D2)
    W: (O, D1 + 1, D2 + 1)  (nn.Bilinear weight, ones column included)
    b: (O,)
    returns: (..., O)
    """
    *lead, D1 = input1.shape
    D2 = input2.shape[-1]
    O, d1e, d2e = W.shape
    assert d1e == D1 + 1 and d2e == D2 + 1
    assert tuple(input2.shape[:-1]) == tuple(lead)

    out_dtype = jnp.result_type(input1.dtype, input2.dtype, W.dtype)

    # Small-problem fallback: everything pads to 128 lanes, so the XLA einsum
    # is faster than paying kernel launch / padded-MXU overhead.
    if use_pallas is None:
        use_pallas = not (D1 <= 64 and D2 <= 64 and O <= 64)
    if not use_pallas:
        return biaffine_reference(input1, input2, W, b).astype(out_dtype)

    x1 = input1.reshape(-1, D1)
    x2 = input2.reshape(-1, D2)
    N = x1.shape[0]

    # ---- ones-column decomposition: bilinear core + linear + constant ----
    Wf = W.astype(jnp.float32)
    w_core = Wf[:, :D1, :D2]                        # (O, D1, D2)
    u1 = Wf[:, :D1, D2]                             # (O, D1)
    u2 = Wf[:, D1, :D2]                             # (O, D2)
    c0 = Wf[:, D1, D2] + b.astype(jnp.float32)      # (O,)
    hi = jax.lax.Precision.HIGHEST
    row_bias = (jnp.dot(x1.astype(jnp.float32), u1.T, precision=hi)
                + jnp.dot(x2.astype(jnp.float32), u2.T, precision=hi)
                + c0[None, :])                      # (N, O) f32, skinny matmuls

    # ---- MXU operands in bf16 (f32 accumulation in-kernel) ----
    mxu_dtype = jnp.bfloat16
    x1c = x1.astype(mxu_dtype)
    x2c = x2.astype(mxu_dtype)

    # ---- D1 chunking (matmul reduction grid axis) ----
    if D1 <= 128:
        kc, d1p = D1, D1            # single chunk, no D1 padding
    else:
        kc, d1p = 128, _round_up(D1, 128)
    n_k = d1p // kc

    op0 = _round_up(O, 128)
    out_isz = jnp.dtype(out_dtype).itemsize

    # ---- generation-aware VMEM budget & tile selection ----
    cap = _vmem_capacity_bytes()
    budget = int(0.45 * cap)

    tn = max(8, min(512, _round_up(N, 8)))
    to_cands = sorted({c for c in (op0, 512, 256, 128) if c <= op0}, reverse=True)
    to = to_cands[-1]
    for cand in to_cands:           # prefer large TO: avoids x1/x2 re-reads
        if _kernel_vmem_bytes(tn, cand, kc, D2, out_isz) <= budget:
            to = cand
            break
    while tn > 8 and _kernel_vmem_bytes(tn, to, kc, D2, out_isz) > budget:
        tn = max(8, tn // 2)

    op = _round_up(op0, to)
    npad = _round_up(N, tn)

    # W_mat[i*D2 + j, o] = W[o, i, j]   (rows / cols zero-padded).
    w_mat = jnp.transpose(w_core, (1, 2, 0)).reshape(D1 * D2, O).astype(mxu_dtype)
    w_mat_p = jnp.zeros((d1p * D2, op), mxu_dtype).at[:D1 * D2, :O].set(w_mat)

    x1p = jnp.zeros((npad, d1p), mxu_dtype).at[:N, :D1].set(x1c)
    x2p = jnp.zeros((npad, D2), mxu_dtype).at[:N, :].set(x2c)
    rbp = jnp.zeros((npad, op), jnp.float32).at[:N, :O].set(row_bias)

    grid = (op // to, npad // tn, n_k)   # O outermost (megacore W residency), K innermost

    in_specs = [
        pl.BlockSpec((tn, kc), lambda jo, i, k: (i, k)),          # x1 D1-chunk
        pl.BlockSpec((tn, D2), lambda jo, i, k: (i, 0)),          # x2 rows (reused over jo/k)
        pl.BlockSpec((kc * D2, to), lambda jo, i, k: (k, jo)),    # W_mat block
        pl.BlockSpec((tn, to), lambda jo, i, k: (i, jo)),         # per-row bias
    ]
    out_spec = pl.BlockSpec((tn, to), lambda jo, i, k: (i, jo))

    flops = int(2 * npad * d1p * D2 * op)
    bytes_accessed = int(
        2 * (x1p.size + x2p.size) * (op // to)       # rows re-read per O tile
        + 2 * w_mat_p.size * (npad // tn)            # W re-read per N tile
        + 4 * rbp.size + out_isz * npad * op)
    cost = pl.CostEstimate(flops=flops, transcendentals=0,
                           bytes_accessed=bytes_accessed)

    needed = _kernel_vmem_bytes(tn, to, kc, D2, out_isz)
    vmem_limit = int(min(0.75 * cap, max(needed + (8 << 20), 24 << 20)))
    vmem_limit = max(vmem_limit, needed + (4 << 20))

    out_padded = pl.pallas_call(
        _biaffine_kernel,
        out_shape=jax.ShapeDtypeStruct((npad, op), out_dtype),
        grid_spec=pltpu.PrefetchScalarGridSpec(
            num_scalar_prefetch=0,
            grid=grid,
            in_specs=in_specs,
            out_specs=out_spec,
            scratch_shapes=[pltpu.VMEM((tn, kc * D2), mxu_dtype),   # phi
                            pltpu.VMEM((tn, to), jnp.float32)],     # accumulator
        ),
        compiler_params=pltpu.CompilerParams(
            dimension_semantics=("parallel", "parallel", "arbitrary"),
            vmem_limit_bytes=vmem_limit,
        ),
        cost_estimate=cost,
    )(x1p, x2p, w_mat_p, rbp)

    out = out_padded[:N, :O]
    return out.reshape(*lead, O).astype(out_dtype)


if __name__ == "__main__":
    key = jax.random.PRNGKey(0)
    ks = jax.random.split(key, 8)

    # ---- Test 1: module-sized shapes, forced through the Pallas kernel ----
    B, S, D1, D2, O = 2, 8, 32, 32, 4
    input1 = jax.random.normal(ks[0], (B, S, D1), jnp.float32)
    input2 = jax.random.normal(ks[1], (B, S, D2), jnp.float32)
    # The module zero-initializes W and b; use random values so the numerical
    # check actually exercises the bilinear math.
    W = 0.1 * jax.random.normal(ks[2], (O, D1 + 1, D2 + 1), jnp.float32)
    b = 0.1 * jax.random.normal(ks[3], (O,), jnp.float32)

    out = jax.block_until_ready(
        biaffine_scorer(input1, input2, W, b, use_pallas=True))
    ref = biaffine_reference(input1, input2, W, b)
    assert out.shape == (B, S, O)
    scale = max(1.0, float(jnp.std(ref)))   # bf16-MXU tolerance, scale-aware
    np.testing.assert_allclose(np.asarray(out), np.asarray(ref),
                               rtol=2e-2, atol=2e-2 * scale)

    # Auto-dispatch picks the XLA fallback at this tiny size; sanity check it.
    out_auto = jax.block_until_ready(biaffine_scorer(input1, input2, W, b))
    np.testing.assert_allclose(np.asarray(out_auto), np.asarray(ref),
                               rtol=1e-5, atol=1e-5)

    # ---- Test 2: larger dims exercising D1 chunking, O padding, bf16 path ----
    B2, S2, D1b, D2b, Ob = 2, 24, 200, 128, 160
    i1b = jax.random.normal(ks[4], (B2, S2, D1b), jnp.float32)
    i2b = jax.random.normal(ks[5], (B2, S2, D2b), jnp.float32)
    Wb = 0.05 * jax.random.normal(ks[6], (Ob, D1b + 1, D2b + 1), jnp.float32)
    bb = 0.05 * jax.random.normal(ks[7], (Ob,), jnp.float32)

    out2 = jax.block_until_ready(biaffine_scorer(i1b, i2b, Wb, bb))
    ref2 = biaffine_reference(i1b, i2b, Wb, bb)
    assert out2.shape == (B2, S2, Ob)
    scale2 = max(1.0, float(jnp.std(ref2)))
    np.testing.assert_allclose(np.asarray(out2), np.asarray(ref2),
                               rtol=2e-2, atol=2e-2 * scale2)

    print("KERNEL_OK")
</pallas_src>

<mosaic_0001>
module attributes {stable_mosaic.version = 11 : i64} {
  func.func @_biaffine_kernel(%arg0: i32, %arg1: i32, %arg2: i32, %arg3: memref<16x32xbf16, #tpu.memory_space<vmem>>, %arg4: memref<16x32xbf16, #tpu.memory_space<vmem>>, %arg5: memref<1024x128xbf16, #tpu.memory_space<vmem>>, %arg6: memref<16x128xf32, #tpu.memory_space<vmem>>, %arg7: memref<16x128xf32, #tpu.memory_space<vmem>>, %arg8: memref<16x1024xbf16, #tpu.memory_space<vmem>>, %arg9: memref<16x128xf32, #tpu.memory_space<vmem>>) attributes {dimension_semantics = [#tpu.dimension_semantics<parallel>, #tpu.dimension_semantics<parallel>, #tpu.dimension_semantics<arbitrary>], iteration_bounds = array<i64: 1, 1, 1>, scalar_prefetch = 0 : i64, scratch_operands = 2 : i64, tpu.core_type = #tpu.core_type<tc>, window_params = [{transform_indices = @transform_0, window_bounds = array<i64: 16, 32>}, {transform_indices = @transform_1, window_bounds = array<i64: 16, 32>}, {transform_indices = @transform_2, window_bounds = array<i64: 1024, 128>}, {transform_indices = @transform_3, window_bounds = array<i64: 16, 128>}, {transform_indices = @transform_4, window_bounds = array<i64: 16, 128>}]} {
    %c0_i32 = arith.constant 0 : i32
    %0 = arith.cmpi eq, %arg2, %c0_i32 : i32
    %1 = arith.extui %0 : i1 to i32
    %c0_i32_0 = arith.constant 0 : i32
    %2 = arith.cmpi ne, %1, %c0_i32_0 : i32
    scf.if %2 {
      %cst_47 = arith.constant 0.000000e+00 : f32
      %142 = vector.broadcast %cst_47 : f32 to vector<16x128xf32>
      %c0_48 = arith.constant 0 : index
      %c0_49 = arith.constant 0 : index
      %143 = vector.load %arg9[%c0_48, %c0_49] : memref<16x128xf32, #tpu.memory_space<vmem>>, vector<16x128xf32>
      tpu.vector_store %arg9[%c0_48, %c0_49], %142 {strides = array<i32>} : memref<16x128xf32, #tpu.memory_space<vmem>>, vector<16x128xf32>,
    } else {
    }
    %c0 = arith.constant 0 : index
    %c0_1 = arith.constant 0 : index
    %3 = vector.load %arg3[%c0, %c0_1] : memref<16x32xbf16, #tpu.memory_space<vmem>>, vector<16x32xbf16>
    %c0_2 = arith.constant 0 : index
    %c0_3 = arith.constant 0 : index
    %4 = vector.load %arg4[%c0_2, %c0_3] : memref<16x32xbf16, #tpu.memory_space<vmem>>, vector<16x32xbf16>
    %5 = vector.extract_strided_slice %3 {offsets = [0, 0], sizes = [16, 1], strides = [1, 1]} : vector<16x32xbf16> to vector<16x1xbf16>
    %6 = vector.broadcast %5 : vector<16x1xbf16> to vector<16x32xbf16>
    %7 = arith.mulf %6, %4 : vector<16x32xbf16>
    %c0_4 = arith.constant 0 : index
    %c0_5 = arith.constant 0 : index
    %8 = vector.load %arg8[%c0_4, %c0_5] : memref<16x1024xbf16, #tpu.memory_space<vmem>>, vector<16x32xbf16>
    tpu.vector_store %arg8[%c0_4, %c0_5], %7 {strides = array<i32>} : memref<16x1024xbf16, #tpu.memory_space<vmem>>, vector<16x32xbf16>,
    %9 = vector.extract_strided_slice %3 {offsets = [0, 1], sizes = [16, 1], strides = [1, 1]} : vector<16x32xbf16> to vector<16x1xbf16>
    %10 = vector.broadcast %9 : vector<16x1xbf16> to vector<16x32xbf16>
    %11 = arith.mulf %10, %4 : vector<16x32xbf16>
    %c0_6 = arith.constant 0 : index
    %c32 = arith.constant 32 : index
    %12 = vector.load %arg8[%c0_6, %c32] : memref<16x1024xbf16, #tpu.memory_space<vmem>>, vector<16x32xbf16>
    tpu.vector_store %arg8[%c0_6, %c32], %11 {strides = array<i32>} : memref<16x1024xbf16, #tpu.memory_space<vmem>>, vector<16x32xbf16>,
    %13 = vector.extract_strided_slice %3 {offsets = [0, 2], sizes = [16, 1], strides = [1, 1]} : vector<16x32xbf16> to vector<16x1xbf16>
    %14 = vector.broadcast %13 : vector<16x1xbf16> to vector<16x32xbf16>
    %15 = arith.mulf %14, %4 : vector<16x32xbf16>
    %c0_7 = arith.constant 0 : index
    %c64 = arith.constant 64 : index
    %16 = vector.load %arg8[%c0_7, %c64] : memref<16x1024xbf16, #tpu.memory_space<vmem>>, vector<16x32xbf16>
    tpu.vector_store %arg8[%c0_7, %c64], %15 {strides = array<i32>} : memref<16x1024xbf16, #tpu.memory_space<vmem>>, vector<16x32xbf16>,
    %17 = vector.extract_strided_slice %3 {offsets = [0, 3], sizes = [16, 1], strides = [1, 1]} : vector<16x32xbf16> to vector<16x1xbf16>
    %18 = vector.broadcast %17 : vector<16x1xbf16> to vector<16x32xbf16>
    %19 = arith.mulf %18, %4 : vector<16x32xbf16>
    %c0_8 = arith.constant 0 : index
    %c96 = arith.constant 96 : index
    %20 = vector.load %arg8[%c0_8, %c96] : memref<16x1024xbf16, #tpu.memory_space<vmem>>, vector<16x32xbf16>
    tpu.vector_store %arg8[%c0_8, %c96], %19 {strides = array<i32>} : memref<16x1024xbf16, #tpu.memory_space<vmem>>, vector<16x32xbf16>,
    %21 = vector.extract_strided_slice %3 {offsets = [0, 4], sizes = [16, 1], strides = [1, 1]} : vector<16x32xbf16> to vector<16x1xbf16>
    %22 = vector.broadcast %21 : vector<16x1xbf16> to vector<16x32xbf16>
    %23 = arith.mulf %22, %4 : vector<16x32xbf16>
    %c0_9 = arith.constant 0 : index
    %c128 = arith.constant 128 : index
    %24 = vector.load %arg8[%c0_9, %c128] : memref<16x1024xbf16, #tpu.memory_space<vmem>>, vector<16x32xbf16>
    tpu.vector_store %arg8[%c0_9, %c128], %23 {strides = array<i32>} : memref<16x1024xbf16, #tpu.memory_space<vmem>>, vector<16x32xbf16>,
    %25 = vector.extract_strided_slice %3 {offsets = [0, 5], sizes = [16, 1], strides = [1, 1]} : vector<16x32xbf16> to vector<16x1xbf16>
    %26 = vector.broadcast %25 : vector<16x1xbf16> to vector<16x32xbf16>
    %27 = arith.mulf %26, %4 : vector<16x32xbf16>
    %c0_10 = arith.constant 0 : index
    %c160 = arith.constant 160 : index
    %28 = vector.load %arg8[%c0_10, %c160] : memref<16x1024xbf16, #tpu.memory_space<vmem>>, vector<16x32xbf16>
    tpu.vector_store %arg8[%c0_10, %c160], %27 {strides = array<i32>} : memref<16x1024xbf16, #tpu.memory_space<vmem>>, vector<16x32xbf16>,
    %29 = vector.extract_strided_slice %3 {offsets = [0, 6], sizes = [16, 1], strides = [1, 1]} : vector<16x32xbf16> to vector<16x1xbf16>
    %30 = vector.broadcast %29 : vector<16x1xbf16> to vector<16x32xbf16>
    %31 = arith.mulf %30, %4 : vector<16x32xbf16>
    %c0_11 = arith.constant 0 : index
    %c192 = arith.constant 192 : index
    %32 = vector.load %arg8[%c0_11, %c192] : memref<16x1024xbf16, #tpu.memory_space<vmem>>, vector<16x32xbf16>
    tpu.vector_store %arg8[%c0_11, %c192], %31 {strides = array<i32>} : memref<16x1024xbf16, #tpu.memory_space<vmem>>, vector<16x32xbf16>,
    %33 = vector.extract_strided_slice %3 {offsets = [0, 7], sizes = [16, 1], strides = [1, 1]} : vector<16x32xbf16> to vector<16x1xbf16>
    %34 = vector.broadcast %33 : vector<16x1xbf16> to vector<16x32xbf16>
    %35 = arith.mulf %34, %4 : vector<16x32xbf16>
    %c0_12 = arith.constant 0 : index
    %c224 = arith.constant 224 : index
    %36 = vector.load %arg8[%c0_12, %c224] : memref<16x1024xbf16, #tpu.memory_space<vmem>>, vector<16x32xbf16>
    tpu.vector_store %arg8[%c0_12, %c224], %35 {strides = array<i32>} : memref<16x1024xbf16, #tpu.memory_space<vmem>>, vector<16x32xbf16>,
    %37 = vector.extract_strided_slice %3 {offsets = [0, 8], sizes = [16, 1], strides = [1, 1]} : vector<16x32xbf16> to vector<16x1xbf16>
    %38 = vector.broadcast %37 : vector<16x1xbf16> to vector<16x32xbf16>
    %39 = arith.mulf %38, %4 : vector<16x32xbf16>
    %c0_13 = arith.constant 0 : index
    %c256 = arith.constant 256 : index
    %40 = vector.load %arg8[%c0_13, %c256] : memref<16x1024xbf16, #tpu.memory_space<vmem>>, vector<16x32xbf16>
    tpu.vector_store %arg8[%c0_13, %c256], %39 {strides = array<i32>} : memref<16x1024xbf16, #tpu.memory_space<vmem>>, vector<16x32xbf16>,
    %41 = vector.extract_strided_slice %3 {offsets = [0, 9], sizes = [16, 1], strides = [1, 1]} : vector<16x32xbf16> to vector<16x1xbf16>
    %42 = vector.broadcast %41 : vector<16x1xbf16> to vector<16x32xbf16>
    %43 = arith.mulf %42, %4 : vector<16x32xbf16>
    %c0_14 = arith.constant 0 : index
    %c288 = arith.constant 288 : index
    %44 = vector.load %arg8[%c0_14, %c288] : memref<16x1024xbf16, #tpu.memory_space<vmem>>, vector<16x32xbf16>
    tpu.vector_store %arg8[%c0_14, %c288], %43 {strides = array<i32>} : memref<16x1024xbf16, #tpu.memory_space<vmem>>, vector<16x32xbf16>,
    %45 = vector.extract_strided_slice %3 {offsets = [0, 10], sizes = [16, 1], strides = [1, 1]} : vector<16x32xbf16> to vector<16x1xbf16>
    %46 = vector.broadcast %45 : vector<16x1xbf16> to vector<16x32xbf16>
    %47 = arith.mulf %46, %4 : vector<16x32xbf16>
    %c0_15 = arith.constant 0 : index
    %c320 = arith.constant 320 : index
    %48 = vector.load %arg8[%c0_15, %c320] : memref<16x1024xbf16, #tpu.memory_space<vmem>>, vector<16x32xbf16>
    tpu.vector_store %arg8[%c0_15, %c320], %47 {strides = array<i32>} : memref<16x1024xbf16, #tpu.memory_space<vmem>>, vector<16x32xbf16>,
    %49 = vector.extract_strided_slice %3 {offsets = [0, 11], sizes = [16, 1], strides = [1, 1]} : vector<16x32xbf16> to vector<16x1xbf16>
    %50 = vector.broadcast %49 : vector<16x1xbf16> to vector<16x32xbf16>
    %51 = arith.mulf %50, %4 : vector<16x32xbf16>
    %c0_16 = arith.constant 0 : index
    %c352 = arith.constant 352 : index
    %52 = vector.load %arg8[%c0_16, %c352] : memref<16x1024xbf16, #tpu.memory_space<vmem>>, vector<16x32xbf16>
    tpu.vector_store %arg8[%c0_16, %c352], %51 {strides = array<i32>} : memref<16x1024xbf16, #tpu.memory_space<vmem>>, vector<16x32xbf16>,
    %53 = vector.extract_strided_slice %3 {offsets = [0, 12], sizes = [16, 1], strides = [1, 1]} : vector<16x32xbf16> to vector<16x1xbf16>
    %54 = vector.broadcast %53 : vector<16x1xbf16> to vector<16x32xbf16>
    %55 = arith.mulf %54, %4 : vector<16x32xbf16>
    %c0_17 = arith.constant 0 : index
    %c384 = arith.constant 384 : index
    %56 = vector.load %arg8[%c0_17, %c384] : memref<16x1024xbf16, #tpu.memory_space<vmem>>, vector<16x32xbf16>
    tpu.vector_store %arg8[%c0_17, %c384], %55 {strides = array<i32>} : memref<16x1024xbf16, #tpu.memory_space<vmem>>, vector<16x32xbf16>,
    %57 = vector.extract_strided_slice %3 {offsets = [0, 13], sizes = [16, 1], strides = [1, 1]} : vector<16x32xbf16> to vector<16x1xbf16>
    %58 = vector.broadcast %57 : vector<16x1xbf16> to vector<16x32xbf16>
    %59 = arith.mulf %58, %4 : vector<16x32xbf16>
    %c0_18 = arith.constant 0 : index
    %c416 = arith.constant 416 : index
    %60 = vector.load %arg8[%c0_18, %c416] : memref<16x1024xbf16, #tpu.memory_space<vmem>>, vector<16x32xbf16>
    tpu.vector_store %arg8[%c0_18, %c416], %59 {strides = array<i32>} : memref<16x1024xbf16, #tpu.memory_space<vmem>>, vector<16x32xbf16>,
    %61 = vector.extract_strided_slice %3 {offsets = [0, 14], sizes = [16, 1], strides = [1, 1]} : vector<16x32xbf16> to vector<16x1xbf16>
    %62 = vector.broadcast %61 : vector<16x1xbf16> to vector<16x32xbf16>
    %63 = arith.mulf %62, %4 : vector<16x32xbf16>
    %c0_19 = arith.constant 0 : index
    %c448 = arith.constant 448 : index
    %64 = vector.load %arg8[%c0_19, %c448] : memref<16x1024xbf16, #tpu.memory_space<vmem>>, vector<16x32xbf16>
    tpu.vector_store %arg8[%c0_19, %c448], %63 {strides = array<i32>} : memref<16x1024xbf16, #tpu.memory_space<vmem>>, vector<16x32xbf16>,
    %65 = vector.extract_strided_slice %3 {offsets = [0, 15], sizes = [16, 1], strides = [1, 1]} : vector<16x32xbf16> to vector<16x1xbf16>
    %66 = vector.broadcast %65 : vector<16x1xbf16> to vector<16x32xbf16>
    %67 = arith.mulf %66, %4 : vector<16x32xbf16>
    %c0_20 = arith.constant 0 : index
    %c480 = arith.constant 480 : index
    %68 = vector.load %arg8[%c0_20, %c480] : memref<16x1024xbf16, #tpu.memory_space<vmem>>, vector<16x32xbf16>
    tpu.vector_store %arg8[%c0_20, %c480], %67 {strides = array<i32>} : memref<16x1024xbf16, #tpu.memory_space<vmem>>, vector<16x32xbf16>,
    %69 = vector.extract_strided_slice %3 {offsets = [0, 16], sizes = [16, 1], strides = [1, 1]} : vector<16x32xbf16> to vector<16x1xbf16>
    %70 = vector.broadcast %69 : vector<16x1xbf16> to vector<16x32xbf16>
    %71 = arith.mulf %70, %4 : vector<16x32xbf16>
    %c0_21 = arith.constant 0 : index
    %c512 = arith.constant 512 : index
    %72 = vector.load %arg8[%c0_21, %c512] : memref<16x1024xbf16, #tpu.memory_space<vmem>>, vector<16x32xbf16>
    tpu.vector_store %arg8[%c0_21, %c512], %71 {strides = array<i32>} : memref<16x1024xbf16, #tpu.memory_space<vmem>>, vector<16x32xbf16>,
    %73 = vector.extract_strided_slice %3 {offsets = [0, 17], sizes = [16, 1], strides = [1, 1]} : vector<16x32xbf16> to vector<16x1xbf16>
    %74 = vector.broadcast %73 : vector<16x1xbf16> to vector<16x32xbf16>
    %75 = arith.mulf %74, %4 : vector<16x32xbf16>
    %c0_22 = arith.constant 0 : index
    %c544 = arith.constant 544 : index
    %76 = vector.load %arg8[%c0_22, %c544] : memref<16x1024xbf16, #tpu.memory_space<vmem>>, vector<16x32xbf16>
    tpu.vector_store %arg8[%c0_22, %c544], %75 {strides = array<i32>} : memref<16x1024xbf16, #tpu.memory_space<vmem>>, vector<16x32xbf16>,
    %77 = vector.extract_strided_slice %3 {offsets = [0, 18], sizes = [16, 1], strides = [1, 1]} : vector<16x32xbf16> to vector<16x1xbf16>
    %78 = vector.broadcast %77 : vector<16x1xbf16> to vector<16x32xbf16>
    %79 = arith.mulf %78, %4 : vector<16x32xbf16>
    %c0_23 = arith.constant 0 : index
    %c576 = arith.constant 576 : index
    %80 = vector.load %arg8[%c0_23, %c576] : memref<16x1024xbf16, #tpu.memory_space<vmem>>, vector<16x32xbf16>
    tpu.vector_store %arg8[%c0_23, %c576], %79 {strides = array<i32>} : memref<16x1024xbf16, #tpu.memory_space<vmem>>, vector<16x32xbf16>,
    %81 = vector.extract_strided_slice %3 {offsets = [0, 19], sizes = [16, 1], strides = [1, 1]} : vector<16x32xbf16> to vector<16x1xbf16>
    %82 = vector.broadcast %81 : vector<16x1xbf16> to vector<16x32xbf16>
    %83 = arith.mulf %82, %4 : vector<16x32xbf16>
    %c0_24 = arith.constant 0 : index
    %c608 = arith.constant 608 : index
    %84 = vector.load %arg8[%c0_24, %c608] : memref<16x1024xbf16, #tpu.memory_space<vmem>>, vector<16x32xbf16>
    tpu.vector_store %arg8[%c0_24, %c608], %83 {strides = array<i32>} : memref<16x1024xbf16, #tpu.memory_space<vmem>>, vector<16x32xbf16>,
    %85 = vector.extract_strided_slice %3 {offsets = [0, 20], sizes = [16, 1], strides = [1, 1]} : vector<16x32xbf16> to vector<16x1xbf16>
    %86 = vector.broadcast %85 : vector<16x1xbf16> to vector<16x32xbf16>
    %87 = arith.mulf %86, %4 : vector<16x32xbf16>
    %c0_25 = arith.constant 0 : index
    %c640 = arith.constant 640 : index
    %88 = vector.load %arg8[%c0_25, %c640] : memref<16x1024xbf16, #tpu.memory_space<vmem>>, vector<16x32xbf16>
    tpu.vector_store %arg8[%c0_25, %c640], %87 {strides = array<i32>} : memref<16x1024xbf16, #tpu.memory_space<vmem>>, vector<16x32xbf16>,
    %89 = vector.extract_strided_slice %3 {offsets = [0, 21], sizes = [16, 1], strides = [1, 1]} : vector<16x32xbf16> to vector<16x1xbf16>
    %90 = vector.broadcast %89 : vector<16x1xbf16> to vector<16x32xbf16>
    %91 = arith.mulf %90, %4 : vector<16x32xbf16>
    %c0_26 = arith.constant 0 : index
    %c672 = arith.constant 672 : index
    %92 = vector.load %arg8[%c0_26, %c672] : memref<16x1024xbf16, #tpu.memory_space<vmem>>, vector<16x32xbf16>
    tpu.vector_store %arg8[%c0_26, %c672], %91 {strides = array<i32>} : memref<16x1024xbf16, #tpu.memory_space<vmem>>, vector<16x32xbf16>,
    %93 = vector.extract_strided_slice %3 {offsets = [0, 22], sizes = [16, 1], strides = [1, 1]} : vector<16x32xbf16> to vector<16x1xbf16>
    %94 = vector.broadcast %93 : vector<16x1xbf16> to vector<16x32xbf16>
    %95 = arith.mulf %94, %4 : vector<16x32xbf16>
    %c0_27 = arith.constant 0 : index
    %c704 = arith.constant 704 : index
    %96 = vector.load %arg8[%c0_27, %c704] : memref<16x1024xbf16, #tpu.memory_space<vmem>>, vector<16x32xbf16>
    tpu.vector_store %arg8[%c0_27, %c704], %95 {strides = array<i32>} : memref<16x1024xbf16, #tpu.memory_space<vmem>>, vector<16x32xbf16>,
    %97 = vector.extract_strided_slice %3 {offsets = [0, 23], sizes = [16, 1], strides = [1, 1]} : vector<16x32xbf16> to vector<16x1xbf16>
    %98 = vector.broadcast %97 : vector<16x1xbf16> to vector<16x32xbf16>
    %99 = arith.mulf %98, %4 : vector<16x32xbf16>
    %c0_28 = arith.constant 0 : index
    %c736 = arith.constant 736 : index
    %100 = vector.load %arg8[%c0_28, %c736] : memref<16x1024xbf16, #tpu.memory_space<vmem>>, vector<16x32xbf16>
    tpu.vector_store %arg8[%c0_28, %c736], %99 {strides = array<i32>} : memref<16x1024xbf16, #tpu.memory_space<vmem>>, vector<16x32xbf16>,
    %101 = vector.extract_strided_slice %3 {offsets = [0, 24], sizes = [16, 1], strides = [1, 1]} : vector<16x32xbf16> to vector<16x1xbf16>
    %102 = vector.broadcast %101 : vector<16x1xbf16> to vector<16x32xbf16>
    %103 = arith.mulf %102, %4 : vector<16x32xbf16>
    %c0_29 = arith.constant 0 : index
    %c768 = arith.constant 768 : index
    %104 = vector.load %arg8[%c0_29, %c768] : memref<16x1024xbf16, #tpu.memory_space<vmem>>, vector<16x32xbf16>
    tpu.vector_store %arg8[%c0_29, %c768], %103 {strides = array<i32>} : memref<16x1024xbf16, #tpu.memory_space<vmem>>, vector<16x32xbf16>,
    %105 = vector.extract_strided_slice %3 {offsets = [0, 25], sizes = [16, 1], strides = [1, 1]} : vector<16x32xbf16> to vector<16x1xbf16>
    %106 = vector.broadcast %105 : vector<16x1xbf16> to vector<16x32xbf16>
    %107 = arith.mulf %106, %4 : vector<16x32xbf16>
    %c0_30 = arith.constant 0 : index
    %c800 = arith.constant 800 : index
    %108 = vector.load %arg8[%c0_30, %c800] : memref<16x1024xbf16, #tpu.memory_space<vmem>>, vector<16x32xbf16>
    tpu.vector_store %arg8[%c0_30, %c800], %107 {strides = array<i32>} : memref<16x1024xbf16, #tpu.memory_space<vmem>>, vector<16x32xbf16>,
    %109 = vector.extract_strided_slice %3 {offsets = [0, 26], sizes = [16, 1], strides = [1, 1]} : vector<16x32xbf16> to vector<16x1xbf16>
    %110 = vector.broadcast %109 : vector<16x1xbf16> to vector<16x32xbf16>
    %111 = arith.mulf %110, %4 : vector<16x32xbf16>
    %c0_31 = arith.constant 0 : index
    %c832 = arith.constant 832 : index
    %112 = vector.load %arg8[%c0_31, %c832] : memref<16x1024xbf16, #tpu.memory_space<vmem>>, vector<16x32xbf16>
    tpu.vector_store %arg8[%c0_31, %c832], %111 {strides = array<i32>} : memref<16x1024xbf16, #tpu.memory_space<vmem>>, vector<16x32xbf16>,
    %113 = vector.extract_strided_slice %3 {offsets = [0, 27], sizes = [16, 1], strides = [1, 1]} : vector<16x32xbf16> to vector<16x1xbf16>
    %114 = vector.broadcast %113 : vector<16x1xbf16> to vector<16x32xbf16>
    %115 = arith.mulf %114, %4 : vector<16x32xbf16>
    %c0_32 = arith.constant 0 : index
    %c864 = arith.constant 864 : index
    %116 = vector.load %arg8[%c0_32, %c864] : memref<16x1024xbf16, #tpu.memory_space<vmem>>, vector<16x32xbf16>
    tpu.vector_store %arg8[%c0_32, %c864], %115 {strides = array<i32>} : memref<16x1024xbf16, #tpu.memory_space<vmem>>, vector<16x32xbf16>,
    %117 = vector.extract_strided_slice %3 {offsets = [0, 28], sizes = [16, 1], strides = [1, 1]} : vector<16x32xbf16> to vector<16x1xbf16>
    %118 = vector.broadcast %117 : vector<16x1xbf16> to vector<16x32xbf16>
    %119 = arith.mulf %118, %4 : vector<16x32xbf16>
    %c0_33 = arith.constant 0 : index
    %c896 = arith.constant 896 : index
    %120 = vector.load %arg8[%c0_33, %c896] : memref<16x1024xbf16, #tpu.memory_space<vmem>>, vector<16x32xbf16>
    tpu.vector_store %arg8[%c0_33, %c896], %119 {strides = array<i32>} : memref<16x1024xbf16, #tpu.memory_space<vmem>>, vector<16x32xbf16>,
    %121 = vector.extract_strided_slice %3 {offsets = [0, 29], sizes = [16, 1], strides = [1, 1]} : vector<16x32xbf16> to vector<16x1xbf16>
    %122 = vector.broadcast %121 : vector<16x1xbf16> to vector<16x32xbf16>
    %123 = arith.mulf %122, %4 : vector<16x32xbf16>
    %c0_34 = arith.constant 0 : index
    %c928 = arith.constant 928 : index
    %124 = vector.load %arg8[%c0_34, %c928] : memref<16x1024xbf16, #tpu.memory_space<vmem>>, vector<16x32xbf16>
    tpu.vector_store %arg8[%c0_34, %c928], %123 {strides = array<i32>} : memref<16x1024xbf16, #tpu.memory_space<vmem>>, vector<16x32xbf16>,
    %125 = vector.extract_strided_slice %3 {offsets = [0, 30], sizes = [16, 1], strides = [1, 1]} : vector<16x32xbf16> to vector<16x1xbf16>
    %126 = vector.broadcast %125 : vector<16x1xbf16> to vector<16x32xbf16>
    %127 = arith.mulf %126, %4 : vector<16x32xbf16>
    %c0_35 = arith.constant 0 : index
    %c960 = arith.constant 960 : index
    %128 = vector.load %arg8[%c0_35, %c960] : memref<16x1024xbf16, #tpu.memory_space<vmem>>, vector<16x32xbf16>
    tpu.vector_store %arg8[%c0_35, %c960], %127 {strides = array<i32>} : memref<16x1024xbf16, #tpu.memory_space<vmem>>, vector<16x32xbf16>,
    %129 = vector.extract_strided_slice %3 {offsets = [0, 31], sizes = [16, 1], strides = [1, 1]} : vector<16x32xbf16> to vector<16x1xbf16>
    %130 = vector.broadcast %129 : vector<16x1xbf16> to vector<16x32xbf16>
    %131 = arith.mulf %130, %4 : vector<16x32xbf16>
    %c0_36 = arith.constant 0 : index
    %c992 = arith.constant 992 : index
    %132 = vector.load %arg8[%c0_36, %c992] : memref<16x1024xbf16, #tpu.memory_space<vmem>>, vector<16x32xbf16>
    tpu.vector_store %arg8[%c0_36, %c992], %131 {strides = array<i32>} : memref<16x1024xbf16, #tpu.memory_space<vmem>>, vector<16x32xbf16>,
    %c0_37 = arith.constant 0 : index
    %c0_38 = arith.constant 0 : index
    %133 = vector.load %arg9[%c0_37, %c0_38] : memref<16x128xf32, #tpu.memory_space<vmem>>, vector<16x128xf32>
    %c0_39 = arith.constant 0 : index
    %c0_40 = arith.constant 0 : index
    %134 = vector.load %arg8[%c0_39, %c0_40] : memref<16x1024xbf16, #tpu.memory_space<vmem>>, vector<16x1024xbf16>
    %c0_41 = arith.constant 0 : index
    %c0_42 = arith.constant 0 : index
    %135 = vector.load %arg5[%c0_41, %c0_42] : memref<1024x128xbf16, #tpu.memory_space<vmem>>, vector<1024x128xbf16>
    %cst = arith.constant dense<0.000000e+00> : vector<16x128xf32>
    %136 = tpu.matmul %134, %135, %cst {dimension_numbers = #tpu.dot_dimension_numbers<[1], [0], [0], [1], [0, 0, 1, 1], [], []>} : vector<16x1024xbf16>, vector<1024x128xbf16>, vector<16x128xf32> -> vector<16x128xf32>
    %137 = arith.addf %133, %136 : vector<16x128xf32>
    %c0_43 = arith.constant 0 : index
    %c0_44 = arith.constant 0 : index
    %138 = vector.load %arg9[%c0_43, %c0_44] : memref<16x128xf32, #tpu.memory_space<vmem>>, vector<16x128xf32>
    tpu.vector_store %arg9[%c0_43, %c0_44], %137 {strides = array<i32>} : memref<16x128xf32, #tpu.memory_space<vmem>>, vector<16x128xf32>,
    %c0_i32_45 = arith.constant 0 : i32
    %139 = arith.cmpi eq, %arg2, %c0_i32_45 : i32
    %140 = arith.extui %139 : i1 to i32
    %c0_i32_46 = arith.constant 0 : i32
    %141 = arith.cmpi ne, %140, %c0_i32_46 : i32
    scf.if %141 {
      %c0_47 = arith.constant 0 : index
      %c0_48 = arith.constant 0 : index
      %142 = vector.load %arg9[%c0_47, %c0_48] : memref<16x128xf32, #tpu.memory_space<vmem>>, vector<16x128xf32>
      %c0_49 = arith.constant 0 : index
      %c0_50 = arith.constant 0 : index
      %143 = vector.load %arg6[%c0_49, %c0_50] : memref<16x128xf32, #tpu.memory_space<vmem>>, vector<16x128xf32>
      %144 = arith.addf %142, %143 : vector<16x128xf32>
      %c0_51 = arith.constant 0 : index
      %c0_52 = arith.constant 0 : index
      %145 = vector.load %arg7[%c0_51, %c0_52] : memref<16x128xf32, #tpu.memory_space<vmem>>, vector<16x128xf32>
      tpu.vector_store %arg7[%c0_51, %c0_52], %144 {strides = array<i32>} : memref<16x128xf32, #tpu.memory_space<vmem>>, vector<16x128xf32>,
    } else {
    }
    return
  }
  func.func @transform_0(%arg0: i32, %arg1: i32, %arg2: i32) -> (i32, i32) {
    %c0_i32 = arith.constant 0 : i32
    return %arg1, %arg2 : i32, i32
  }
  func.func @transform_1(%arg0: i32, %arg1: i32, %arg2: i32) -> (i32, i32) {
    %c0_i32 = arith.constant 0 : i32
    %c0_i32_0 = arith.constant 0 : i32
    return %arg1, %c0_i32 : i32, i32
  }
  func.func @transform_2(%arg0: i32, %arg1: i32, %arg2: i32) -> (i32, i32) {
    %c0_i32 = arith.constant 0 : i32
    return %arg2, %arg0 : i32, i32
  }
  func.func @transform_3(%arg0: i32, %arg1: i32, %arg2: i32) -> (i32, i32) {
    %c0_i32 = arith.constant 0 : i32
    return %arg1, %arg0 : i32, i32
  }
  func.func @transform_4(%arg0: i32, %arg1: i32, %arg2: i32) -> (i32, i32) {
    %c0_i32 = arith.constant 0 : i32
    return %arg1, %arg0 : i32, i32
  }
}

</mosaic_0001>

<llo_original>
// kernel: tpu_custom_call.1
$region0: #{tpu_custom_call.1}
  #allocation0 [shape = 'u32[]', space=smem, size = 0x4, offset = 0x4, fixed_abs, tag = 'smem constant byte address 0x4 - core index']
  #allocation1 [shape = 'u32[72,128]{1,0:T(1,128)}', space=vmem, size = 0x9000, scoped, tag = 'internal scratch']
  #allocation2 [shape = 'bf16[16,1024]{1,0:T(8,128)(2,1)}', space=vmem, size = 0x8000, scoped, tag = 'scratch operand']
  #allocation3 [shape = 'f32[16,128]{1,0:T(8,128)}', space=vmem, size = 0x2000, scoped, tag = 'scratch operand']
  %s0 = inlined_call_operand.hbm [shape: bf16[16,32], index: 0, kind: input, shape index: {}]
  %s1 = inlined_call_operand.hbm [shape: bf16[16,32], index: 1, kind: input, shape index: {}]
  %s2 = inlined_call_operand.hbm [shape: bf16[1024,128], index: 2, kind: input, shape index: {}]
  %s3 = inlined_call_operand.hbm [shape: f32[16,128], index: 3, kind: input, shape index: {}]
  %s4 = inlined_call_operand.hbm [shape: f32[16,128], index: 4, kind: output, shape index: {}]
  %s5 = sld [smem:[#allocation0]]
  $region50: #{tpu_custom_call.1} parent=0
    _
  %s7 = ssub.s32 1, %s5
  %s8 = scalar_select 0, %s7, %s5
  $region1: #{tpu_custom_call.1} parent=0
    #allocation4 [shape = 'u8[4096]{0}', space=vmem, size = 0x1000, scoped, tag = 'input window, operand 0, single buffered']
    #allocation5 [shape = 's32[1]{0}', space=sflag, size = 0x4, scoped, tag = 'scoped memory for tpu_custom_call.1']
    #allocation6 [shape = 's32[1]{0}', space=sflag, size = 0x4, scoped, tag = 'scoped memory for tpu_custom_call.1']
    #allocation7 [shape = 'u8[4096]{0}', space=vmem, size = 0x1000, scoped, tag = 'input window, operand 1, single buffered']
    #allocation8 [shape = 's32[1]{0}', space=sflag, size = 0x4, scoped, tag = 'scoped memory for tpu_custom_call.1']
    #allocation9 [shape = 'u8[262144]{0}', space=vmem, size = 0x40000, scoped, tag = 'input window, operand 2, single buffered']
    #allocation10 [shape = 'u8[8192]{0}', space=vmem, size = 0x2000, scoped, tag = 'input window, operand 3, single buffered']
    #allocation11 [shape = 's32[1]{0}', space=sflag, size = 0x4, scoped, tag = 'scoped memory for tpu_custom_call.1']
    #allocation12 [shape = 'u8[8192]{0}', space=vmem, size = 0x2000, scoped, tag = 'output window, operand 0, single buffered']
    %9 = vsyncpa [#allocation5], 0
    %10 = vsyncpa [#allocation8], 0
    %11 = vsyncpa [#allocation11], 0
    %12 = vsyncpa [#allocation6], 0
    // Predicated region
    $region2: #{tpu_custom_call.1} parent=1 // pred_check
      _
    $region3: #{tpu_custom_call.1} parent=1 // pred_check_branch
      %14 = sbr.rel (0) target = $region5
    $region4: #{tpu_custom_call.1} parent=1 // pred_region
      %16 = vsyncadd [#allocation5], 0
      %s17 = sshll.u32 %s0, 4
      %s18 = int_to_ptr.hbm [resolvable:$true] %s17
      %s19 = sshll.u32 [#allocation4], 4
      %s20 = int_to_ptr.vmem [resolvable:$true] %s19
      %25 = dma.hbm_to_vmem [thread:$0]  %s18, 128, %s20, [#allocation5], 64, 64, 4
    $region5: #{tpu_custom_call.1} parent=1 // pred_fallthru
      _
    // Predicated region
    $region6: #{tpu_custom_call.1} parent=1 // pred_check
      _
    $region7: #{tpu_custom_call.1} parent=1 // pred_check_branch
      %27 = sbr.rel (0) target = $region9
    $region8: #{tpu_custom_call.1} parent=1 // pred_region
      %29 = vsyncadd [#allocation8], 0
      %s30 = sshll.u32 %s1, 4
      %s31 = int_to_ptr.hbm [resolvable:$true] %s30
      %s32 = sshll.u32 [#allocation7], 4
      %s33 = int_to_ptr.vmem [resolvable:$true] %s32
      %38 = dma.hbm_to_vmem [thread:$0]  %s31, 128, %s33, [#allocation8], 64, 64, 4
    $region9: #{tpu_custom_call.1} parent=1 // pred_fallthru
      _
    // Predicated region
    $region10: #{tpu_custom_call.1} parent=1 // pred_check
      _
    $region11: #{tpu_custom_call.1} parent=1 // pred_check_branch
      %40 = sbr.rel (0) target = $region13
    $region12: #{tpu_custom_call.1} parent=1 // pred_region
      %42 = vsyncadd [#allocation8], 0
      %s43 = sshll.u32 %s2, 4
      %s44 = int_to_ptr.hbm [resolvable:$true] %s43
      %s45 = sshll.u32 [#allocation9], 4
      %s46 = int_to_ptr.vmem [resolvable:$true] %s45
      %51 = dma.hbm_to_vmem [thread:$0]  %s44, 8192, %s46, [#allocation8], 64, 64, 4
    $region13: #{tpu_custom_call.1} parent=1 // pred_fallthru
      _
    // Predicated region
    $region14: #{tpu_custom_call.1} parent=1 // pred_check
      _
    $region15: #{tpu_custom_call.1} parent=1 // pred_check_branch
      %53 = sbr.rel (0) target = $region17
    $region16: #{tpu_custom_call.1} parent=1 // pred_region
      %55 = vsyncadd [#allocation11], 0
      %s56 = sshll.u32 %s3, 4
      %s57 = int_to_ptr.hbm [resolvable:$true] %s56
      %s58 = sshll.u32 [#allocation10], 4
      %s59 = int_to_ptr.vmem [resolvable:$true] %s58
      %64 = dma.hbm_to_vmem [thread:$0]  %s57, 256, %s59, [#allocation11], 128, 128, 8
    $region17: #{tpu_custom_call.1} parent=1 // pred_fallthru
      _
    // Predicated region
    $region18: #{tpu_custom_call.1} parent=1 // pred_check
      _
    $region19: #{tpu_custom_call.1} parent=1 // pred_check_branch
      %66 = sbr.rel (0) target = $region21
    $region20: #{tpu_custom_call.1} parent=1 // pred_region
      %68 = dma.done [#allocation5], 128
    $region21: #{tpu_custom_call.1} parent=1 // pred_fallthru
      _
    // Predicated region
    $region22: #{tpu_custom_call.1} parent=1 // pred_check
      _
    $region23: #{tpu_custom_call.1} parent=1 // pred_check_branch
      %70 = sbr.rel (0) target = $region25
    $region24: #{tpu_custom_call.1} parent=1 // pred_region
      %72 = dma.done [#allocation8], 128
    $region25: #{tpu_custom_call.1} parent=1 // pred_fallthru
      _
    // Predicated region
    $region26: #{tpu_custom_call.1} parent=1 // pred_check
      _
    $region27: #{tpu_custom_call.1} parent=1 // pred_check_branch
      %74 = sbr.rel (0) target = $region29
    $region28: #{tpu_custom_call.1} parent=1 // pred_region
      %76 = dma.done [#allocation8], 8192
    $region29: #{tpu_custom_call.1} parent=1 // pred_fallthru
      _
    // Predicated region
    $region30: #{tpu_custom_call.1} parent=1 // pred_check
      _
    $region31: #{tpu_custom_call.1} parent=1 // pred_check_branch
      %78 = sbr.rel (0) target = $region33
    $region32: #{tpu_custom_call.1} parent=1 // pred_region
      %80 = dma.done [#allocation11], 256
    $region33: #{tpu_custom_call.1} parent=1 // pred_fallthru
      _
    %p81 = scmp.eq.s32.totalorder 0, 0
    // Predicated region
    $region34: #{tpu_custom_call.1} parent=1 // pred_check
      %p82 = pneg %p81
    $region35: #{tpu_custom_call.1} parent=1 // pred_check_branch
      %84 = sbr.rel (%p82) target = $region37
    $region36: #{tpu_custom_call.1} parent=1 // pred_region
      %85 = vst [vmem:[#allocation3] sm:$0xff] 0.0
      %86 = vst [vmem:[#allocation3 + $0x8] sm:$0xff] 0.0
    $region37: #{tpu_custom_call.1} parent=1 // pred_fallthru
      _
    %v87 = vld [vmem:[#allocation4] sm:$0xf]
    %v88 = vld [vmem:[#allocation4 + $0x4] sm:$0xf]
    %v89 = vld [vmem:[#allocation7] sm:$0xf]
    %v90 = vld [vmem:[#allocation7 + $0x4] sm:$0xf]
    %92 = vset.pattern.permute.xlu0 0
    %93 = vperm.xlu0 %92, %v87
    %v94 = vpop.permute.xlu0 %93
    %v97 = vunpack.c.l.s4 839922192
    %v98 = vunpack.c.0.s8 %v97
    %v99 = vperm.slane %v94, %v98
    %101 = vset.pattern.permute.xlu0 0
    %102 = vperm.xlu0 %101, %v88
    %v103 = vpop.permute.xlu0 %102
    %v106 = vunpack.c.l.s4 839922192
    %v107 = vunpack.c.0.s8 %v106
    %v108 = vperm.slane %v103, %v107
    %v109 = vunpack.c.l.bf16 %v99
    %v110 = vunpack.c.l.bf16 %v108
    %v111 = vunpack.c.l.bf16 %v89
    %v112 = vunpack.c.l.bf16 %v90
    %v113 = vmul.f32 %v109, %v111
    %v114 = vmul.f32 %v110, %v112
    %v115 = vpack.c.bf16 %v113, %v113
    %v116 = vpack.c.bf16 %v114, %v114
    %vm117 = vcmask 257024
    %118 = vst.msk [vmem:[#allocation2] sm:$0xf] %vm117, %v115
    %119 = vst.msk [vmem:[#allocation2 + $0x20] sm:$0xf] %vm117, %v116
    %120 = vset.pattern.permute.xlu0 1
    %121 = vperm.xlu0 %120, %v87
    %v122 = vpop.permute.xlu0 %121
    %v125 = vunpack.c.l.s4 839922192
    %v126 = vunpack.c.0.s8 %v125
    %v127 = vperm.slane %v122, %v126
    %128 = vset.pattern.permute.xlu0 1
    %129 = vperm.xlu0 %128, %v88
    %v130 = vpop.permute.xlu0 %129
    %v133 = vunpack.c.l.s4 839922192
    %v134 = vunpack.c.0.s8 %v133
    %v135 = vperm.slane %v130, %v134
    %v136 = vunpack.c.l.bf16 %v127
    %v137 = vunpack.c.l.bf16 %v135
    %v138 = vmul.f32 %v136, %v111
    %v139 = vmul.f32 %v137, %v112
    %v140 = vpack.c.bf16 %v138, %v138
    %v141 = vpack.c.bf16 %v139, %v139
    %144 = vrot.lane.b32.xlu0 %v140, 32
    %v145 = vpop.permute.xlu0 %144
    %146 = vrot.lane.b32.xlu0 %v141, 32
    %v147 = vpop.permute.xlu0 %146
    %vm150 = vcmask 519424
    %151 = vst.msk [vmem:[#allocation2] sm:$0xf] %vm150, %v145
    %152 = vst.msk [vmem:[#allocation2 + $0x20] sm:$0xf] %vm150, %v147
    %153 = vset.pattern.permute.xlu0 2
    %154 = vperm.xlu0 %153, %v87
    %v155 = vpop.permute.xlu0 %154
    %v158 = vunpack.c.l.s4 839922192
    %v159 = vunpack.c.0.s8 %v158
    %v160 = vperm.slane %v155, %v159
    %161 = vset.pattern.permute.xlu0 2
    %162 = vperm.xlu0 %161, %v88
    %v163 = vpop.permute.xlu0 %162
    %v166 = vunpack.c.l.s4 839922192
    %v167 = vunpack.c.0.s8 %v166
    %v168 = vperm.slane %v163, %v167
    %v169 = vunpack.c.l.bf16 %v160
    %v170 = vunpack.c.l.bf16 %v168
    %v171 = vmul.f32 %v169, %v111
    %v172 = vmul.f32 %v170, %v112
    %v173 = vpack.c.bf16 %v171, %v171
    %v174 = vpack.c.bf16 %v172, %v172
    %177 = vrot.lane.b32.xlu0 %v173, 64
    %v178 = vpop.permute.xlu0 %177
    %179 = vrot.lane.b32.xlu0 %v174, 64
    %v180 = vpop.permute.xlu0 %179
    %vm183 = vcmask 781824
    %184 = vst.msk [vmem:[#allocation2] sm:$0xf] %vm183, %v178
    %185 = vst.msk [vmem:[#allocation2 + $0x20] sm:$0xf] %vm183, %v180
    %186 = vset.pattern.permute.xlu0 3
    %187 = vperm.xlu0 %186, %v87
    %v188 = vpop.permute.xlu0 %187
    %v191 = vunpack.c.l.s4 839922192
    %v192 = vunpack.c.0.s8 %v191
    %v193 = vperm.slane %v188, %v192
    %194 = vset.pattern.permute.xlu0 3
    %195 = vperm.xlu0 %194, %v88
    %v196 = vpop.permute.xlu0 %195
    %v199 = vunpack.c.l.s4 839922192
    %v200 = vunpack.c.0.s8 %v199
    %v201 = vperm.slane %v196, %v200
    %v202 = vunpack.c.l.bf16 %v193
    %v203 = vunpack.c.l.bf16 %v201
    %v204 = vmul.f32 %v202, %v111
    %v205 = vmul.f32 %v203, %v112
    %v206 = vpack.c.bf16 %v204, %v204
    %v207 = vpack.c.bf16 %v205, %v205
    %210 = vrot.lane.b32.xlu0 %v206, 96
    %v211 = vpop.permute.xlu0 %210
    %212 = vrot.lane.b32.xlu0 %v207, 96
    %v213 = vpop.permute.xlu0 %212
    %vm216 = vcmask 1044224
    %217 = vst.msk [vmem:[#allocation2] sm:$0xf] %vm216, %v211
    %218 = vst.msk [vmem:[#allocation2 + $0x20] sm:$0xf] %vm216, %v213
    %219 = vset.pattern.permute.xlu0 4
    %220 = vperm.xlu0 %219, %v87
    %v221 = vpop.permute.xlu0 %220
    %v224 = vunpack.c.l.s4 839922192
    %v225 = vunpack.c.0.s8 %v224
    %v226 = vperm.slane %v221, %v225
    %227 = vset.pattern.permute.xlu0 4
    %228 = vperm.xlu0 %227, %v88
    %v229 = vpop.permute.xlu0 %228
    %v232 = vunpack.c.l.s4 839922192
    %v233 = vunpack.c.0.s8 %v232
    %v234 = vperm.slane %v229, %v233
    %v235 = vunpack.c.l.bf16 %v226
    %v236 = vunpack.c.l.bf16 %v234
    %v237 = vmul.f32 %v235, %v111
    %v238 = vmul.f32 %v236, %v112
    %v239 = vpack.c.bf16 %v237, %v237
    %v240 = vpack.c.bf16 %v238, %v238
    %241 = vst.msk [vmem:[#allocation2 + $0x4] sm:$0xf] %vm117, %v239
    %242 = vst.msk [vmem:[#allocation2 + $0x24] sm:$0xf] %vm117, %v240
    %243 = vset.pattern.permute.xlu0 5
    %244 = vperm.xlu0 %243, %v87
    %v245 = vpop.permute.xlu0 %244
    %v248 = vunpack.c.l.s4 839922192
    %v249 = vunpack.c.0.s8 %v248
    %v250 = vperm.slane %v245, %v249
    %251 = vset.pattern.permute.xlu0 5
    %252 = vperm.xlu0 %251, %v88
    %v253 = vpop.permute.xlu0 %252
    %v256 = vunpack.c.l.s4 839922192
    %v257 = vunpack.c.0.s8 %v256
    %v258 = vperm.slane %v253, %v257
    %v259 = vunpack.c.l.bf16 %v250
    %v260 = vunpack.c.l.bf16 %v258
    %v261 = vmul.f32 %v259, %v111
    %v262 = vmul.f32 %v260, %v112
    %v263 = vpack.c.bf16 %v261, %v261
    %v264 = vpack.c.bf16 %v262, %v262
    %267 = vrot.lane.b32.xlu0 %v263, 32
    %v268 = vpop.permute.xlu0 %267
    %269 = vrot.lane.b32.xlu0 %v264, 32
    %v270 = vpop.permute.xlu0 %269
    %273 = vst.msk [vmem:[#allocation2 + $0x4] sm:$0xf] %vm150, %v268
    %274 = vst.msk [vmem:[#allocation2 + $0x24] sm:$0xf] %vm150, %v270
    %275 = vset.pattern.permute.xlu0 6
    %276 = vperm.xlu0 %275, %v87
    %v277 = vpop.permute.xlu0 %276
    %v280 = vunpack.c.l.s4 839922192
    %v281 = vunpack.c.0.s8 %v280
    %v282 = vperm.slane %v277, %v281
    %283 = vset.pattern.permute.xlu0 6
    %284 = vperm.xlu0 %283, %v88
    %v285 = vpop.permute.xlu0 %284
    %v288 = vunpack.c.l.s4 839922192
    %v289 = vunpack.c.0.s8 %v288
    %v290 = vperm.slane %v285, %v289
    %v291 = vunpack.c.l.bf16 %v282
    %v292 = vunpack.c.l.bf16 %v290
    %v293 = vmul.f32 %v291, %v111
    %v294 = vmul.f32 %v292, %v112
    %v295 = vpack.c.bf16 %v293, %v293
    %v296 = vpack.c.bf16 %v294, %v294
    %299 = vrot.lane.b32.xlu0 %v295, 64
    %v300 = vpop.permute.xlu0 %299
    %301 = vrot.lane.b32.xlu0 %v296, 64
    %v302 = vpop.permute.xlu0 %301
    %305 = vst.msk [vmem:[#allocation2 + $0x4] sm:$0xf] %vm183, %v300
    %306 = vst.msk [vmem:[#allocation2 + $0x24] sm:$0xf] %vm183, %v302
    %307 = vset.pattern.permute.xlu0 7
    %308 = vperm.xlu0 %307, %v87
    %v309 = vpop.permute.xlu0 %308
    %v312 = vunpack.c.l.s4 839922192
    %v313 = vunpack.c.0.s8 %v312
    %v314 = vperm.slane %v309, %v313
    %315 = vset.pattern.permute.xlu0 7
    %316 = vperm.xlu0 %315, %v88
    %v317 = vpop.permute.xlu0 %316
    %v320 = vunpack.c.l.s4 839922192
    %v321 = vunpack.c.0.s8 %v320
    %v322 = vperm.slane %v317, %v321
    %v323 = vunpack.c.l.bf16 %v314
    %v324 = vunpack.c.l.bf16 %v322
    %v325 = vmul.f32 %v323, %v111
    %v326 = vmul.f32 %v324, %v112
    %v327 = vpack.c.bf16 %v325, %v325
    %v328 = vpack.c.bf16 %v326, %v326
    %331 = vrot.lane.b32.xlu0 %v327, 96
    %v332 = vpop.permute.xlu0 %331
    %333 = vrot.lane.b32.xlu0 %v328, 96
    %v334 = vpop.permute.xlu0 %333
    %337 = vst.msk [vmem:[#allocation2 + $0x4] sm:$0xf] %vm216, %v332
    %338 = vst.msk [vmem:[#allocation2 + $0x24] sm:$0xf] %vm216, %v334
    %339 = vset.pattern.permute.xlu0 8
    %340 = vperm.xlu0 %339, %v87
    %v341 = vpop.permute.xlu0 %340
    %v344 = vunpack.c.l.s4 839922192
    %v345 = vunpack.c.0.s8 %v344
    %v346 = vperm.slane %v341, %v345
    %347 = vset.pattern.permute.xlu0 8
    %348 = vperm.xlu0 %347, %v88
    %v349 = vpop.permute.xlu0 %348
    %v352 = vunpack.c.l.s4 839922192
    %v353 = vunpack.c.0.s8 %v352
    %v354 = vperm.slane %v349, %v353
    %v355 = vunpack.c.l.bf16 %v346
    %v356 = vunpack.c.l.bf16 %v354
    %v357 = vmul.f32 %v355, %v111
    %v358 = vmul.f32 %v356, %v112
    %v359 = vpack.c.bf16 %v357, %v357
    %v360 = vpack.c.bf16 %v358, %v358
    %361 = vst.msk [vmem:[#allocation2 + $0x8] sm:$0xf] %vm117, %v359
    %362 = vst.msk [vmem:[#allocation2 + $0x28] sm:$0xf] %vm117, %v360
    %363 = vset.pattern.permute.xlu0 9
    %364 = vperm.xlu0 %363, %v87
    %v365 = vpop.permute.xlu0 %364
    %v368 = vunpack.c.l.s4 839922192
    %v369 = vunpack.c.0.s8 %v368
    %v370 = vperm.slane %v365, %v369
    %371 = vset.pattern.permute.xlu0 9
    %372 = vperm.xlu0 %371, %v88
    %v373 = vpop.permute.xlu0 %372
    %v376 = vunpack.c.l.s4 839922192
    %v377 = vunpack.c.0.s8 %v376
    %v378 = vperm.slane %v373, %v377
    %v379 = vunpack.c.l.bf16 %v370
    %v380 = vunpack.c.l.bf16 %v378
    %v381 = vmul.f32 %v379, %v111
    %v382 = vmul.f32 %v380, %v112
    %v383 = vpack.c.bf16 %v381, %v381
    %v384 = vpack.c.bf16 %v382, %v382
    %387 = vrot.lane.b32.xlu0 %v383, 32
    %v388 = vpop.permute.xlu0 %387
    %389 = vrot.lane.b32.xlu0 %v384, 32
    %v390 = vpop.permute.xlu0 %389
    %393 = vst.msk [vmem:[#allocation2 + $0x8] sm:$0xf] %vm150, %v388
    %394 = vst.msk [vmem:[#allocation2 + $0x28] sm:$0xf] %vm150, %v390
    %395 = vset.pattern.permute.xlu0 10
    %396 = vperm.xlu0 %395, %v87
    %v397 = vpop.permute.xlu0 %396
    %v400 = vunpack.c.l.s4 839922192
    %v401 = vunpack.c.0.s8 %v400
    %v402 = vperm.slane %v397, %v401
    %403 = vset.pattern.permute.xlu0 10
    %404 = vperm.xlu0 %403, %v88
    %v405 = vpop.permute.xlu0 %404
    %v408 = vunpack.c.l.s4 839922192
    %v409 = vunpack.c.0.s8 %v408
    %v410 = vperm.slane %v405, %v409
    %v411 = vunpack.c.l.bf16 %v402
    %v412 = vunpack.c.l.bf16 %v410
    %v413 = vmul.f32 %v411, %v111
    %v414 = vmul.f32 %v412, %v112
    %v415 = vpack.c.bf16 %v413, %v413
    %v416 = vpack.c.bf16 %v414, %v414
    %419 = vrot.lane.b32.xlu0 %v415, 64
    %v420 = vpop.permute.xlu0 %419
    %421 = vrot.lane.b32.xlu0 %v416, 64
    %v422 = vpop.permute.xlu0 %421
    %425 = vst.msk [vmem:[#allocation2 + $0x8] sm:$0xf] %vm183, %v420
    %426 = vst.msk [vmem:[#allocation2 + $0x28] sm:$0xf] %vm183, %v422
    %427 = vset.pattern.permute.xlu0 11
    %428 = vperm.xlu0 %427, %v87
    %v429 = vpop.permute.xlu0 %428
    %v432 = vunpack.c.l.s4 839922192
    %v433 = vunpack.c.0.s8 %v432
    %v434 = vperm.slane %v429, %v433
    %435 = vset.pattern.permute.xlu0 11
    %436 = vperm.xlu0 %435, %v88
    %v437 = vpop.permute.xlu0 %436
    %v440 = vunpack.c.l.s4 839922192
    %v441 = vunpack.c.0.s8 %v440
    %v442 = vperm.slane %v437, %v441
    %v443 = vunpack.c.l.bf16 %v434
    %v444 = vunpack.c.l.bf16 %v442
    %v445 = vmul.f32 %v443, %v111
    %v446 = vmul.f32 %v444, %v112
    %v447 = vpack.c.bf16 %v445, %v445
    %v448 = vpack.c.bf16 %v446, %v446
    %451 = vrot.lane.b32.xlu0 %v447, 96
    %v452 = vpop.permute.xlu0 %451
    %453 = vrot.lane.b32.xlu0 %v448, 96
    %v454 = vpop.permute.xlu0 %453
    %457 = vst.msk [vmem:[#allocation2 + $0x8] sm:$0xf] %vm216, %v452
    %458 = vst.msk [vmem:[#allocation2 + $0x28] sm:$0xf] %vm216, %v454
    %459 = vset.pattern.permute.xlu0 12
    %460 = vperm.xlu0 %459, %v87
    %v461 = vpop.permute.xlu0 %460
    %v464 = vunpack.c.l.s4 839922192
    %v465 = vunpack.c.0.s8 %v464
    %v466 = vperm.slane %v461, %v465
    %467 = vset.pattern.permute.xlu0 12
    %468 = vperm.xlu0 %467, %v88
    %v469 = vpop.permute.xlu0 %468
    %v472 = vunpack.c.l.s4 839922192
    %v473 = vunpack.c.0.s8 %v472
    %v474 = vperm.slane %v469, %v473
    %v475 = vunpack.c.l.bf16 %v466
    %v476 = vunpack.c.l.bf16 %v474
    %v477 = vmul.f32 %v475, %v111
    %v478 = vmul.f32 %v476, %v112
    %v479 = vpack.c.bf16 %v477, %v477
    %v480 = vpack.c.bf16 %v478, %v478
    %481 = vst.msk [vmem:[#allocation2 + $0xc] sm:$0xf] %vm117, %v479
    %482 = vst.msk [vmem:[#allocation2 + $0x2c] sm:$0xf] %vm117, %v480
    %483 = vset.pattern.permute.xlu0 13
    %484 = vperm.xlu0 %483, %v87
    %v485 = vpop.permute.xlu0 %484
    %v488 = vunpack.c.l.s4 839922192
    %v489 = vunpack.c.0.s8 %v488
    %v490 = vperm.slane %v485, %v489
    %491 = vset.pattern.permute.xlu0 13
    %492 = vperm.xlu0 %491, %v88
    %v493 = vpop.permute.xlu0 %492
    %v496 = vunpack.c.l.s4 839922192
    %v497 = vunpack.c.0.s8 %v496
    %v498 = vperm.slane %v493, %v497
    %v499 = vunpack.c.l.bf16 %v490
    %v500 = vunpack.c.l.bf16 %v498
    %v501 = vmul.f32 %v499, %v111
    %v502 = vmul.f32 %v500, %v112
    %v503 = vpack.c.bf16 %v501, %v501
    %v504 = vpack.c.bf16 %v502, %v502
    %507 = vrot.lane.b32.xlu0 %v503, 32
    %v508 = vpop.permute.xlu0 %507
    %509 = vrot.lane.b32.xlu0 %v504, 32
    %v510 = vpop.permute.xlu0 %509
    %513 = vst.msk [vmem:[#allocation2 + $0xc] sm:$0xf] %vm150, %v508
    %514 = vst.msk [vmem:[#allocation2 + $0x2c] sm:$0xf] %vm150, %v510
    %515 = vset.pattern.permute.xlu0 14
    %516 = vperm.xlu0 %515, %v87
    %v517 = vpop.permute.xlu0 %516
    %v520 = vunpack.c.l.s4 839922192
    %v521 = vunpack.c.0.s8 %v520
    %v522 = vperm.slane %v517, %v521
    %523 = vset.pattern.permute.xlu0 14
    %524 = vperm.xlu0 %523, %v88
    %v525 = vpop.permute.xlu0 %524
    %v528 = vunpack.c.l.s4 839922192
    %v529 = vunpack.c.0.s8 %v528
    %v530 = vperm.slane %v525, %v529
    %v531 = vunpack.c.l.bf16 %v522
    %v532 = vunpack.c.l.bf16 %v530
    %v533 = vmul.f32 %v531, %v111
    %v534 = vmul.f32 %v532, %v112
    %v535 = vpack.c.bf16 %v533, %v533
    %v536 = vpack.c.bf16 %v534, %v534
    %539 = vrot.lane.b32.xlu0 %v535, 64
    %v540 = vpop.permute.xlu0 %539
    %541 = vrot.lane.b32.xlu0 %v536, 64
    %v542 = vpop.permute.xlu0 %541
    %545 = vst.msk [vmem:[#allocation2 + $0xc] sm:$0xf] %vm183, %v540
    %546 = vst.msk [vmem:[#allocation2 + $0x2c] sm:$0xf] %vm183, %v542
    %547 = vset.pattern.permute.xlu0 15
    %548 = vperm.xlu0 %547, %v87
    %v549 = vpop.permute.xlu0 %548
    %v552 = vunpack.c.l.s4 839922192
    %v553 = vunpack.c.0.s8 %v552
    %v554 = vperm.slane %v549, %v553
    %555 = vset.pattern.permute.xlu0 15
    %556 = vperm.xlu0 %555, %v88
    %v557 = vpop.permute.xlu0 %556
    %v560 = vunpack.c.l.s4 839922192
    %v561 = vunpack.c.0.s8 %v560
    %v562 = vperm.slane %v557, %v561
    %v563 = vunpack.c.l.bf16 %v554
    %v564 = vunpack.c.l.bf16 %v562
    %v565 = vmul.f32 %v563, %v111
    %v566 = vmul.f32 %v564, %v112
    %v567 = vpack.c.bf16 %v565, %v565
    %v568 = vpack.c.bf16 %v566, %v566
    %571 = vrot.lane.b32.xlu0 %v567, 96
    %v572 = vpop.permute.xlu0 %571
    %573 = vrot.lane.b32.xlu0 %v568, 96
    %v574 = vpop.permute.xlu0 %573
    %577 = vst.msk [vmem:[#allocation2 + $0xc] sm:$0xf] %vm216, %v572
    %578 = vst.msk [vmem:[#allocation2 + $0x2c] sm:$0xf] %vm216, %v574
    %579 = vset.pattern.permute.xlu0 16
    %580 = vperm.xlu0 %579, %v87
    %v581 = vpop.permute.xlu0 %580
    %v584 = vunpack.c.l.s4 839922192
    %v585 = vunpack.c.0.s8 %v584
    %v586 = vperm.slane %v581, %v585
    %587 = vset.pattern.permute.xlu0 16
    %588 = vperm.xlu0 %587, %v88
    %v589 = vpop.permute.xlu0 %588
    %v592 = vunpack.c.l.s4 839922192
    %v593 = vunpack.c.0.s8 %v592
    %v594 = vperm.slane %v589, %v593
    %v595 = vunpack.c.l.bf16 %v586
    %v596 = vunpack.c.l.bf16 %v594
    %v597 = vmul.f32 %v595, %v111
    %v598 = vmul.f32 %v596, %v112
    %v599 = vpack.c.bf16 %v597, %v597
    %v600 = vpack.c.bf16 %v598, %v598
    %601 = vst.msk [vmem:[#allocation2 + $0x10] sm:$0xf] %vm117, %v599
    %602 = vst.msk [vmem:[#allocation2 + $0x30] sm:$0xf] %vm117, %v600
    %603 = vset.pattern.permute.xlu0 17
    %604 = vperm.xlu0 %603, %v87
    %v605 = vpop.permute.xlu0 %604
    %v608 = vunpack.c.l.s4 839922192
    %v609 = vunpack.c.0.s8 %v608
    %v610 = vperm.slane %v605, %v609
    %611 = vset.pattern.permute.xlu0 17
    %612 = vperm.xlu0 %611, %v88
    %v613 = vpop.permute.xlu0 %612
    %v616 = vunpack.c.l.s4 839922192
    %v617 = vunpack.c.0.s8 %v616
    %v618 = vperm.slane %v613, %v617
    %v619 = vunpack.c.l.bf16 %v610
    %v620 = vunpack.c.l.bf16 %v618
    %v621 = vmul.f32 %v619, %v111
    %v622 = vmul.f32 %v620, %v112
    %v623 = vpack.c.bf16 %v621, %v621
    %v624 = vpack.c.bf16 %v622, %v622
    %627 = vrot.lane.b32.xlu0 %v623, 32
    %v628 = vpop.permute.xlu0 %627
    %629 = vrot.lane.b32.xlu0 %v624, 32
    %v630 = vpop.permute.xlu0 %629
    %633 = vst.msk [vmem:[#allocation2 + $0x10] sm:$0xf] %vm150, %v628
    %634 = vst.msk [vmem:[#allocation2 + $0x30] sm:$0xf] %vm150, %v630
    %635 = vset.pattern.permute.xlu0 18
    %636 = vperm.xlu0 %635, %v87
    %v637 = vpop.permute.xlu0 %636
    %v640 = vunpack.c.l.s4 839922192
    %v641 = vunpack.c.0.s8 %v640
    %v642 = vperm.slane %v637, %v641
    %643 = vset.pattern.permute.xlu0 18
    %644 = vperm.xlu0 %643, %v88
    %v645 = vpop.permute.xlu0 %644
    %v648 = vunpack.c.l.s4 839922192
    %v649 = vunpack.c.0.s8 %v648
    %v650 = vperm.slane %v645, %v649
    %v651 = vunpack.c.l.bf16 %v642
    %v652 = vunpack.c.l.bf16 %v650
    %v653 = vmul.f32 %v651, %v111
    %v654 = vmul.f32 %v652, %v112
    %v655 = vpack.c.bf16 %v653, %v653
    %v656 = vpack.c.bf16 %v654, %v654
    %659 = vrot.lane.b32.xlu0 %v655, 64
    %v660 = vpop.permute.xlu0 %659
    %661 = vrot.lane.b32.xlu0 %v656, 64
    %v662 = vpop.permute.xlu0 %661
    %665 = vst.msk [vmem:[#allocation2 + $0x10] sm:$0xf] %vm183, %v660
    %666 = vst.msk [vmem:[#allocation2 + $0x30] sm:$0xf] %vm183, %v662
    %667 = vset.pattern.permute.xlu0 19
    %668 = vperm.xlu0 %667, %v87
    %v669 = vpop.permute.xlu0 %668
    %v672 = vunpack.c.l.s4 839922192
    %v673 = vunpack.c.0.s8 %v672
    %v674 = vperm.slane %v669, %v673
    %675 = vset.pattern.permute.xlu0 19
    %676 = vperm.xlu0 %675, %v88
    %v677 = vpop.permute.xlu0 %676
    %v680 = vunpack.c.l.s4 839922192
    %v681 = vunpack.c.0.s8 %v680
    %v682 = vperm.slane %v677, %v681
    %v683 = vunpack.c.l.bf16 %v674
    %v684 = vunpack.c.l.bf16 %v682
    %v685 = vmul.f32 %v683, %v111
    %v686 = vmul.f32 %v684, %v112
    %v687 = vpack.c.bf16 %v685, %v685
    %v688 = vpack.c.bf16 %v686, %v686
    %691 = vrot.lane.b32.xlu0 %v687, 96
    %v692 = vpop.permute.xlu0 %691
    %693 = vrot.lane.b32.xlu0 %v688, 96
    %v694 = vpop.permute.xlu0 %693
    %697 = vst.msk [vmem:[#allocation2 + $0x10] sm:$0xf] %vm216, %v692
    %698 = vst.msk [vmem:[#allocation2 + $0x30] sm:$0xf] %vm216, %v694
    %699 = vset.pattern.permute.xlu0 20
    %700 = vperm.xlu0 %699, %v87
    %v701 = vpop.permute.xlu0 %700
    %v704 = vunpack.c.l.s4 839922192
    %v705 = vunpack.c.0.s8 %v704
    %v706 = vperm.slane %v701, %v705
    %707 = vset.pattern.permute.xlu0 20
    %708 = vperm.xlu0 %707, %v88
    %v709 = vpop.permute.xlu0 %708
    %v712 = vunpack.c.l.s4 839922192
    %v713 = vunpack.c.0.s8 %v712
    %v714 = vperm.slane %v709, %v713
    %v715 = vunpack.c.l.bf16 %v706
    %v716 = vunpack.c.l.bf16 %v714
    %v717 = vmul.f32 %v715, %v111
    %v718 = vmul.f32 %v716, %v112
    %v719 = vpack.c.bf16 %v717, %v717
    %v720 = vpack.c.bf16 %v718, %v718
    %721 = vst.msk [vmem:[#allocation2 + $0x14] sm:$0xf] %vm117, %v719
    %722 = vst.msk [vmem:[#allocation2 + $0x34] sm:$0xf] %vm117, %v720
    %723 = vset.pattern.permute.xlu0 21
    %724 = vperm.xlu0 %723, %v87
    %v725 = vpop.permute.xlu0 %724
    %v728 = vunpack.c.l.s4 839922192
    %v729 = vunpack.c.0.s8 %v728
    %v730 = vperm.slane %v725, %v729
    %731 = vset.pattern.permute.xlu0 21
    %732 = vperm.xlu0 %731, %v88
    %v733 = vpop.permute.xlu0 %732
    %v736 = vunpack.c.l.s4 839922192
    %v737 = vunpack.c.0.s8 %v736
    %v738 = vperm.slane %v733, %v737
    %v739 = vunpack.c.l.bf16 %v730
    %v740 = vunpack.c.l.bf16 %v738
    %v741 = vmul.f32 %v739, %v111
    %v742 = vmul.f32 %v740, %v112
    %v743 = vpack.c.bf16 %v741, %v741
    %v744 = vpack.c.bf16 %v742, %v742
    %747 = vrot.lane.b32.xlu0 %v743, 32
    %v748 = vpop.permute.xlu0 %747
    %749 = vrot.lane.b32.xlu0 %v744, 32
    %v750 = vpop.permute.xlu0 %749
    %753 = vst.msk [vmem:[#allocation2 + $0x14] sm:$0xf] %vm150, %v748
    %754 = vst.msk [vmem:[#allocation2 + $0x34] sm:$0xf] %vm150, %v750
    %755 = vset.pattern.permute.xlu0 22
    %756 = vperm.xlu0 %755, %v87
    %v757 = vpop.permute.xlu0 %756
    %v760 = vunpack.c.l.s4 839922192
    %v761 = vunpack.c.0.s8 %v760
    %v762 = vperm.slane %v757, %v761
    %763 = vset.pattern.permute.xlu0 22
    %764 = vperm.xlu0 %763, %v88
    %v765 = vpop.permute.xlu0 %764
    %v768 = vunpack.c.l.s4 839922192
    %v769 = vunpack.c.0.s8 %v768
    %v770 = vperm.slane %v765, %v769
    %v771 = vunpack.c.l.bf16 %v762
    %v772 = vunpack.c.l.bf16 %v770
    %v773 = vmul.f32 %v771, %v111
    %v774 = vmul.f32 %v772, %v112
    %v775 = vpack.c.bf16 %v773, %v773
    %v776 = vpack.c.bf16 %v774, %v774
    %779 = vrot.lane.b32.xlu0 %v775, 64
    %v780 = vpop.permute.xlu0 %779
    %781 = vrot.lane.b32.xlu0 %v776, 64
    %v782 = vpop.permute.xlu0 %781
    %785 = vst.msk [vmem:[#allocation2 + $0x14] sm:$0xf] %vm183, %v780
    %786 = vst.msk [vmem:[#allocation2 + $0x34] sm:$0xf] %vm183, %v782
    %787 = vset.pattern.permute.xlu0 23
    %788 = vperm.xlu0 %787, %v87
    %v789 = vpop.permute.xlu0 %788
    %v792 = vunpack.c.l.s4 839922192
    %v793 = vunpack.c.0.s8 %v792
    %v794 = vperm.slane %v789, %v793
    %795 = vset.pattern.permute.xlu0 23
    %796 = vperm.xlu0 %795, %v88
    %v797 = vpop.permute.xlu0 %796
    %v800 = vunpack.c.l.s4 839922192
    %v801 = vunpack.c.0.s8 %v800
    %v802 = vperm.slane %v797, %v801
    %v803 = vunpack.c.l.bf16 %v794
    %v804 = vunpack.c.l.bf16 %v802
    %v805 = vmul.f32 %v803, %v111
    %v806 = vmul.f32 %v804, %v112
    %v807 = vpack.c.bf16 %v805, %v805
    %v808 = vpack.c.bf16 %v806, %v806
    %811 = vrot.lane.b32.xlu0 %v807, 96
    %v812 = vpop.permute.xlu0 %811
    %813 = vrot.lane.b32.xlu0 %v808, 96
    %v814 = vpop.permute.xlu0 %813
    %817 = vst.msk [vmem:[#allocation2 + $0x14] sm:$0xf] %vm216, %v812
    %818 = vst.msk [vmem:[#allocation2 + $0x34] sm:$0xf] %vm216, %v814
    %819 = vset.pattern.permute.xlu0 24
    %820 = vperm.xlu0 %819, %v87
    %v821 = vpop.permute.xlu0 %820
    %v824 = vunpack.c.l.s4 839922192
    %v825 = vunpack.c.0.s8 %v824
    %v826 = vperm.slane %v821, %v825
    %827 = vset.pattern.permute.xlu0 24
    %828 = vperm.xlu0 %827, %v88
    %v829 = vpop.permute.xlu0 %828
    %v832 = vunpack.c.l.s4 839922192
    %v833 = vunpack.c.0.s8 %v832
    %v834 = vperm.slane %v829, %v833
    %v835 = vunpack.c.l.bf16 %v826
    %v836 = vunpack.c.l.bf16 %v834
    %v837 = vmul.f32 %v835, %v111
    %v838 = vmul.f32 %v836, %v112
    %v839 = vpack.c.bf16 %v837, %v837
    %v840 = vpack.c.bf16 %v838, %v838
    %841 = vst.msk [vmem:[#allocation2 + $0x18] sm:$0xf] %vm117, %v839
    %842 = vst.msk [vmem:[#allocation2 + $0x38] sm:$0xf] %vm117, %v840
    %843 = vset.pattern.permute.xlu0 25
    %844 = vperm.xlu0 %843, %v87
    %v845 = vpop.permute.xlu0 %844
    %v848 = vunpack.c.l.s4 839922192
    %v849 = vunpack.c.0.s8 %v848
    %v850 = vperm.slane %v845, %v849
    %851 = vset.pattern.permute.xlu0 25
    %852 = vperm.xlu0 %851, %v88
    %v853 = vpop.permute.xlu0 %852
    %v856 = vunpack.c.l.s4 839922192
    %v857 = vunpack.c.0.s8 %v856
    %v858 = vperm.slane %v853, %v857
    %v859 = vunpack.c.l.bf16 %v850
    %v860 = vunpack.c.l.bf16 %v858
    %v861 = vmul.f32 %v859, %v111
    %v862 = vmul.f32 %v860, %v112
    %v863 = vpack.c.bf16 %v861, %v861
    %v864 = vpack.c.bf16 %v862, %v862
    %867 = vrot.lane.b32.xlu0 %v863, 32
    %v868 = vpop.permute.xlu0 %867
    %869 = vrot.lane.b32.xlu0 %v864, 32
    %v870 = vpop.permute.xlu0 %869
    %873 = vst.msk [vmem:[#allocation2 + $0x18] sm:$0xf] %vm150, %v868
    %874 = vst.msk [vmem:[#allocation2 + $0x38] sm:$0xf] %vm150, %v870
    %875 = vset.pattern.permute.xlu0 26
    %876 = vperm.xlu0 %875, %v87
    %v877 = vpop.permute.xlu0 %876
    %v880 = vunpack.c.l.s4 839922192
    %v881 = vunpack.c.0.s8 %v880
    %v882 = vperm.slane %v877, %v881
    %883 = vset.pattern.permute.xlu0 26
    %884 = vperm.xlu0 %883, %v88
    %v885 = vpop.permute.xlu0 %884
    %v888 = vunpack.c.l.s4 839922192
    %v889 = vunpack.c.0.s8 %v888
    %v890 = vperm.slane %v885, %v889
    %v891 = vunpack.c.l.bf16 %v882
    %v892 = vunpack.c.l.bf16 %v890
    %v893 = vmul.f32 %v891, %v111
    %v894 = vmul.f32 %v892, %v112
    %v895 = vpack.c.bf16 %v893, %v893
    %v896 = vpack.c.bf16 %v894, %v894
    %899 = vrot.lane.b32.xlu0 %v895, 64
    %v900 = vpop.permute.xlu0 %899
    %901 = vrot.lane.b32.xlu0 %v896, 64
    %v902 = vpop.permute.xlu0 %901
    %905 = vst.msk [vmem:[#allocation2 + $0x18] sm:$0xf] %vm183, %v900
    %906 = vst.msk [vmem:[#allocation2 + $0x38] sm:$0xf] %vm183, %v902
    %907 = vset.pattern.permute.xlu0 27
    %908 = vperm.xlu0 %907, %v87
    %v909 = vpop.permute.xlu0 %908
    %v912 = vunpack.c.l.s4 839922192
    %v913 = vunpack.c.0.s8 %v912
    %v914 = vperm.slane %v909, %v913
    %915 = vset.pattern.permute.xlu0 27
    %916 = vperm.xlu0 %915, %v88
    %v917 = vpop.permute.xlu0 %916
    %v920 = vunpack.c.l.s4 839922192
    %v921 = vunpack.c.0.s8 %v920
    %v922 = vperm.slane %v917, %v921
    %v923 = vunpack.c.l.bf16 %v914
    %v924 = vunpack.c.l.bf16 %v922
    %v925 = vmul.f32 %v923, %v111
    %v926 = vmul.f32 %v924, %v112
    %v927 = vpack.c.bf16 %v925, %v925
    %v928 = vpack.c.bf16 %v926, %v926
    %931 = vrot.lane.b32.xlu0 %v927, 96
    %v932 = vpop.permute.xlu0 %931
    %933 = vrot.lane.b32.xlu0 %v928, 96
    %v934 = vpop.permute.xlu0 %933
    %937 = vst.msk [vmem:[#allocation2 + $0x18] sm:$0xf] %vm216, %v932
    %938 = vst.msk [vmem:[#allocation2 + $0x38] sm:$0xf] %vm216, %v934
    %939 = vset.pattern.permute.xlu0 28
    %940 = vperm.xlu0 %939, %v87
    %v941 = vpop.permute.xlu0 %940
    %v944 = vunpack.c.l.s4 839922192
    %v945 = vunpack.c.0.s8 %v944
    %v946 = vperm.slane %v941, %v945
    %947 = vset.pattern.permute.xlu0 28
    %948 = vperm.xlu0 %947, %v88
    %v949 = vpop.permute.xlu0 %948
    %v952 = vunpack.c.l.s4 839922192
    %v953 = vunpack.c.0.s8 %v952
    %v954 = vperm.slane %v949, %v953
    %v955 = vunpack.c.l.bf16 %v946
    %v956 = vunpack.c.l.bf16 %v954
    %v957 = vmul.f32 %v955, %v111
    %v958 = vmul.f32 %v956, %v112
    %v959 = vpack.c.bf16 %v957, %v957
    %v960 = vpack.c.bf16 %v958, %v958
    %961 = vst.msk [vmem:[#allocation2 + $0x1c] sm:$0xf] %vm117, %v959
    %962 = vst.msk [vmem:[#allocation2 + $0x3c] sm:$0xf] %vm117, %v960
    %963 = vset.pattern.permute.xlu0 29
    %964 = vperm.xlu0 %963, %v87
    %v965 = vpop.permute.xlu0 %964
    %v968 = vunpack.c.l.s4 839922192
    %v969 = vunpack.c.0.s8 %v968
    %v970 = vperm.slane %v965, %v969
    %971 = vset.pattern.permute.xlu0 29
    %972 = vperm.xlu0 %971, %v88
    %v973 = vpop.permute.xlu0 %972
    %v976 = vunpack.c.l.s4 839922192
    %v977 = vunpack.c.0.s8 %v976
    %v978 = vperm.slane %v973, %v977
    %v979 = vunpack.c.l.bf16 %v970
    %v980 = vunpack.c.l.bf16 %v978
    %v981 = vmul.f32 %v979, %v111
    %v982 = vmul.f32 %v980, %v112
    %v983 = vpack.c.bf16 %v981, %v981
    %v984 = vpack.c.bf16 %v982, %v982
    %987 = vrot.lane.b32.xlu0 %v983, 32
    %v988 = vpop.permute.xlu0 %987
    %989 = vrot.lane.b32.xlu0 %v984, 32
    %v990 = vpop.permute.xlu0 %989
    %993 = vst.msk [vmem:[#allocation2 + $0x1c] sm:$0xf] %vm150, %v988
    %994 = vst.msk [vmem:[#allocation2 + $0x3c] sm:$0xf] %vm150, %v990
    %995 = vset.pattern.permute.xlu0 30
    %996 = vperm.xlu0 %995, %v87
    %v997 = vpop.permute.xlu0 %996
    %v1000 = vunpack.c.l.s4 839922192
    %v1001 = vunpack.c.0.s8 %v1000
    %v1002 = vperm.slane %v997, %v1001
    %1003 = vset.pattern.permute.xlu0 30
    %1004 = vperm.xlu0 %1003, %v88
    %v1005 = vpop.permute.xlu0 %1004
    %v1008 = vunpack.c.l.s4 839922192
    %v1009 = vunpack.c.0.s8 %v1008
    %v1010 = vperm.slane %v1005, %v1009
    %v1011 = vunpack.c.l.bf16 %v1002
    %v1012 = vunpack.c.l.bf16 %v1010
    %v1013 = vmul.f32 %v1011, %v111
    %v1014 = vmul.f32 %v1012, %v112
    %v1015 = vpack.c.bf16 %v1013, %v1013
    %v1016 = vpack.c.bf16 %v1014, %v1014
    %1019 = vrot.lane.b32.xlu0 %v1015, 64
    %v1020 = vpop.permute.xlu0 %1019
    %1021 = vrot.lane.b32.xlu0 %v1016, 64
    %v1022 = vpop.permute.xlu0 %1021
    %1025 = vst.msk [vmem:[#allocation2 + $0x1c] sm:$0xf] %vm183, %v1020
    %1026 = vst.msk [vmem:[#allocation2 + $0x3c] sm:$0xf] %vm183, %v1022
    %1027 = vset.pattern.permute.xlu0 31
    %1028 = vperm.xlu0 %1027, %v87
    %v1029 = vpop.permute.xlu0 %1028
    %v1032 = vunpack.c.l.s4 839922192
    %v1033 = vunpack.c.0.s8 %v1032
    %v1034 = vperm.slane %v1029, %v1033
    %1035 = vset.pattern.permute.xlu0 31
    %1036 = vperm.xlu0 %1035, %v88
    %v1037 = vpop.permute.xlu0 %1036
    %v1040 = vunpack.c.l.s4 839922192
    %v1041 = vunpack.c.0.s8 %v1040
    %v1042 = vperm.slane %v1037, %v1041
    %v1043 = vunpack.c.l.bf16 %v1034
    %v1044 = vunpack.c.l.bf16 %v1042
    %v1045 = vmul.f32 %v1043, %v111
    %v1046 = vmul.f32 %v1044, %v112
    %v1047 = vpack.c.bf16 %v1045, %v1045
    %v1048 = vpack.c.bf16 %v1046, %v1046
    %1051 = vrot.lane.b32.xlu0 %v1047, 96
    %v1052 = vpop.permute.xlu0 %1051
    %1053 = vrot.lane.b32.xlu0 %v1048, 96
    %v1054 = vpop.permute.xlu0 %1053
    %1057 = vst.msk [vmem:[#allocation2 + $0x1c] sm:$0xf] %vm216, %v1052
    %1058 = vst.msk [vmem:[#allocation2 + $0x3c] sm:$0xf] %vm216, %v1054
    %v1059 = vld [vmem:[#allocation3] sm:$0xff]
    %v1060 = vld [vmem:[#allocation3 + $0x8] sm:$0xff]
    %v1061 = vld [vmem:[#allocation2] sm:$0xff]
    %v1062 = vld [vmem:[#allocation2 + $0x8] sm:$0xff]
    %v1063 = vld [vmem:[#allocation2 + $0x10] sm:$0xff]
    %v1064 = vld [vmem:[#allocation2 + $0x18] sm:$0xff]
    %v1065 = vld [vmem:[#allocation2 + $0x20] sm:$0xff]
    %v1066 = vld [vmem:[#allocation2 + $0x28] sm:$0xff]
    %v1067 = vld [vmem:[#allocation2 + $0x30] sm:$0xff]
    %v1068 = vld [vmem:[#allocation2 + $0x38] sm:$0xff]
    %v1069 = vld [vmem:[#allocation9] sm:$0xf]
    %v1070 = vld [vmem:[#allocation9 + $0x4] sm:$0xf]
    %v1071 = vld [vmem:[#allocation9 + $0x8] sm:$0xf]
    %v1072 = vld [vmem:[#allocation9 + $0xc] sm:$0xf]
    %v1073 = vld [vmem:[#allocation9 + $0x10] sm:$0xf]
    %v1074 = vld [vmem:[#allocation9 + $0x14] sm:$0xf]
    %v1075 = vld [vmem:[#allocation9 + $0x18] sm:$0xf]
    %v1076 = vld [vmem:[#allocation9 + $0x1c] sm:$0xf]
    %v1077 = vld [vmem:[#allocation9 + $0x20] sm:$0xf]
    %v1078 = vld [vmem:[#allocation9 + $0x24] sm:$0xf]
    %v1079 = vld [vmem:[#allocation9 + $0x28] sm:$0xf]
    %v1080 = vld [vmem:[#allocation9 + $0x2c] sm:$0xf]
    %v1081 = vld [vmem:[#allocation9 + $0x30] sm:$0xf]
    %v1082 = vld [vmem:[#allocation9 + $0x34] sm:$0xf]
    %v1083 = vld [vmem:[#allocation9 + $0x38] sm:$0xf]
    %v1084 = vld [vmem:[#allocation9 + $0x3c] sm:$0xf]
    %v1085 = vld [vmem:[#allocation9 + $0x40] sm:$0xf]
    %v1086 = vld [vmem:[#allocation9 + $0x44] sm:$0xf]
    %v1087 = vld [vmem:[#allocation9 + $0x48] sm:$0xf]
    %v1088 = vld [vmem:[#allocation9 + $0x4c] sm:$0xf]
    %v1089 = vld [vmem:[#allocation9 + $0x50] sm:$0xf]
    %v1090 = vld [vmem:[#allocation9 + $0x54] sm:$0xf]
    %v1091 = vld [vmem:[#allocation9 + $0x58] sm:$0xf]
    %v1092 = vld [vmem:[#allocation9 + $0x5c] sm:$0xf]
    %v1093 = vld [vmem:[#allocation9 + $0x60] sm:$0xf]
    %v1094 = vld [vmem:[#allocation9 + $0x64] sm:$0xf]
    %v1095 = vld [vmem:[#allocation9 + $0x68] sm:$0xf]
    %v1096 = vld [vmem:[#allocation9 + $0x6c] sm:$0xf]
    %v1097 = vld [vmem:[#allocation9 + $0x70] sm:$0xf]
    %v1098 = vld [vmem:[#allocation9 + $0x74] sm:$0xf]
    %v1099 = vld [vmem:[#allocation9 + $0x78] sm:$0xf]
    %v1100 = vld [vmem:[#allocation9 + $0x7c] sm:$0xf]
    %v1101 = vld [vmem:[#allocation9 + $0x80] sm:$0xf]
    %v1102 = vld [vmem:[#allocation9 + $0x84] sm:$0xf]
    %v1103 = vld [vmem:[#allocation9 + $0x88] sm:$0xf]
    %v1104 = vld [vmem:[#allocation9 + $0x8c] sm:$0xf]
    %v1105 = vld [vmem:[#allocation9 + $0x90] sm:$0xf]
    %v1106 = vld [vmem:[#allocation9 + $0x94] sm:$0xf]
    %v1107 = vld [vmem:[#allocation9 + $0x98] sm:$0xf]
    %v1108 = vld [vmem:[#allocation9 + $0x9c] sm:$0xf]
    %v1109 = vld [vmem:[#allocation9 + $0xa0] sm:$0xf]
    %v1110 = vld [vmem:[#allocation9 + $0xa4] sm:$0xf]
    %v1111 = vld [vmem:[#allocation9 + $0xa8] sm:$0xf]
    %v1112 = vld [vmem:[#allocation9 + $0xac] sm:$0xf]
    %v1113 = vld [vmem:[#allocation9 + $0xb0] sm:$0xf]
    %v1114 = vld [vmem:[#allocation9 + $0xb4] sm:$0xf]
    %v1115 = vld [vmem:[#allocation9 + $0xb8] sm:$0xf]
    %v1116 = vld [vmem:[#allocation9 + $0xbc] sm:$0xf]
    %v1117 = vld [vmem:[#allocation9 + $0xc0] sm:$0xf]
    %v1118 = vld [vmem:[#allocation9 + $0xc4] sm:$0xf]
    %v1119 = vld [vmem:[#allocation9 + $0xc8] sm:$0xf]
    %v1120 = vld [vmem:[#allocation9 + $0xcc] sm:$0xf]
    %v1121 = vld [vmem:[#allocation9 + $0xd0] sm:$0xf]
    %v1122 = vld [vmem:[#allocation9 + $0xd4] sm:$0xf]
    %v1123 = vld [vmem:[#allocation9 + $0xd8] sm:$0xf]
    %v1124 = vld [vmem:[#allocation9 + $0xdc] sm:$0xf]
    %v1125 = vld [vmem:[#allocation9 + $0xe0] sm:$0xf]
    %v1126 = vld [vmem:[#allocation9 + $0xe4] sm:$0xf]
    %v1127 = vld [vmem:[#allocation9 + $0xe8] sm:$0xf]
    %v1128 = vld [vmem:[#allocation9 + $0xec] sm:$0xf]
    %v1129 = vld [vmem:[#allocation9 + $0xf0] sm:$0xf]
    %v1130 = vld [vmem:[#allocation9 + $0xf4] sm:$0xf]
    %v1131 = vld [vmem:[#allocation9 + $0xf8] sm:$0xf]
    %v1132 = vld [vmem:[#allocation9 + $0xfc] sm:$0xf]
    %v1133 = vld [vmem:[#allocation9 + $0x100] sm:$0xf]
    %v1134 = vld [vmem:[#allocation9 + $0x104] sm:$0xf]
    %v1135 = vld [vmem:[#allocation9 + $0x108] sm:$0xf]
    %v1136 = vld [vmem:[#allocation9 + $0x10c] sm:$0xf]
    %v1137 = vld [vmem:[#allocation9 + $0x110] sm:$0xf]
    %v1138 = vld [vmem:[#allocation9 + $0x114] sm:$0xf]
    %v1139 = vld [vmem:[#allocation9 + $0x118] sm:$0xf]
    %v1140 = vld [vmem:[#allocation9 + $0x11c] sm:$0xf]
    %v1141 = vld [vmem:[#allocation9 + $0x120] sm:$0xf]
    %v1142 = vld [vmem:[#allocation9 + $0x124] sm:$0xf]
    %v1143 = vld [vmem:[#allocation9 + $0x128] sm:$0xf]
    %v1144 = vld [vmem:[#allocation9 + $0x12c] sm:$0xf]
    %v1145 = vld [vmem:[#allocation9 + $0x130] sm:$0xf]
    %v1146 = vld [vmem:[#allocation9 + $0x134] sm:$0xf]
    %v1147 = vld [vmem:[#allocation9 + $0x138] sm:$0xf]
    %v1148 = vld [vmem:[#allocation9 + $0x13c] sm:$0xf]
    %v1149 = vld [vmem:[#allocation9 + $0x140] sm:$0xf]
    %v1150 = vld [vmem:[#allocation9 + $0x144] sm:$0xf]
    %v1151 = vld [vmem:[#allocation9 + $0x148] sm:$0xf]
    %v1152 = vld [vmem:[#allocation9 + $0x14c] sm:$0xf]
    %v1153 = vld [vmem:[#allocation9 + $0x150] sm:$0xf]
    %v1154 = vld [vmem:[#allocation9 + $0x154] sm:$0xf]
    %v1155 = vld [vmem:[#allocation9 + $0x158] sm:$0xf]
    %v1156 = vld [vmem:[#allocation9 + $0x15c] sm:$0xf]
    %v1157 = vld [vmem:[#allocation9 + $0x160] sm:$0xf]
    %v1158 = vld [vmem:[#allocation9 + $0x164] sm:$0xf]
    %v1159 = vld [vmem:[#allocation9 + $0x168] sm:$0xf]
    %v1160 = vld [vmem:[#allocation9 + $0x16c] sm:$0xf]
    %v1161 = vld [vmem:[#allocation9 + $0x170] sm:$0xf]
    %v1162 = vld [vmem:[#allocation9 + $0x174] sm:$0xf]
    %v1163 = vld [vmem:[#allocation9 + $0x178] sm:$0xf]
    %v1164 = vld [vmem:[#allocation9 + $0x17c] sm:$0xf]
    %v1165 = vld [vmem:[#allocation9 + $0x180] sm:$0xf]
    %v1166 = vld [vmem:[#allocation9 + $0x184] sm:$0xf]
    %v1167 = vld [vmem:[#allocation9 + $0x188] sm:$0xf]
    %v1168 = vld [vmem:[#allocation9 + $0x18c] sm:$0xf]
    %v1169 = vld [vmem:[#allocation9 + $0x190] sm:$0xf]
    %v1170 = vld [vmem:[#allocation9 + $0x194] sm:$0xf]
    %v1171 = vld [vmem:[#allocation9 + $0x198] sm:$0xf]
    %v1172 = vld [vmem:[#allocation9 + $0x19c] sm:$0xf]
    %v1173 = vld [vmem:[#allocation9 + $0x1a0] sm:$0xf]
    %v1174 = vld [vmem:[#allocation9 + $0x1a4] sm:$0xf]
    %v1175 = vld [vmem:[#allocation9 + $0x1a8] sm:$0xf]
    %v1176 = vld [vmem:[#allocation9 + $0x1ac] sm:$0xf]
    %v1177 = vld [vmem:[#allocation9 + $0x1b0] sm:$0xf]
    %v1178 = vld [vmem:[#allocation9 + $0x1b4] sm:$0xf]
    %v1179 = vld [vmem:[#allocation9 + $0x1b8] sm:$0xf]
    %v1180 = vld [vmem:[#allocation9 + $0x1bc] sm:$0xf]
    %v1181 = vld [vmem:[#allocation9 + $0x1c0] sm:$0xf]
    %v1182 = vld [vmem:[#allocation9 + $0x1c4] sm:$0xf]
    %v1183 = vld [vmem:[#allocation9 + $0x1c8] sm:$0xf]
    %v1184 = vld [vmem:[#allocation9 + $0x1cc] sm:$0xf]
    %v1185 = vld [vmem:[#allocation9 + $0x1d0] sm:$0xf]
    %v1186 = vld [vmem:[#allocation9 + $0x1d4] sm:$0xf]
    %v1187 = vld [vmem:[#allocation9 + $0x1d8] sm:$0xf]
    %v1188 = vld [vmem:[#allocation9 + $0x1dc] sm:$0xf]
    %v1189 = vld [vmem:[#allocation9 + $0x1e0] sm:$0xf]
    %v1190 = vld [vmem:[#allocation9 + $0x1e4] sm:$0xf]
    %v1191 = vld [vmem:[#allocation9 + $0x1e8] sm:$0xf]
    %v1192 = vld [vmem:[#allocation9 + $0x1ec] sm:$0xf]
    %v1193 = vld [vmem:[#allocation9 + $0x1f0] sm:$0xf]
    %v1194 = vld [vmem:[#allocation9 + $0x1f4] sm:$0xf]
    %v1195 = vld [vmem:[#allocation9 + $0x1f8] sm:$0xf]
    %v1196 = vld [vmem:[#allocation9 + $0x1fc] sm:$0xf]
    %v1205 = vunpack.c.l.b16 %v1061
    %v1206 = vunpack.c.h.b16 %v1061
    %v1207 = vunpack.c.l.b16 %v1062
    %v1208 = vunpack.c.h.b16 %v1062
    %v1209 = vunpack.c.l.b16 %v1063
    %v1210 = vunpack.c.h.b16 %v1063
    %v1211 = vunpack.c.l.b16 %v1064
    %v1212 = vunpack.c.h.b16 %v1064
    %v1213 = vunpack.c.l.b16 %v1065
    %v1214 = vunpack.c.h.b16 %v1065
    %v1215 = vunpack.c.l.b16 %v1066
    %v1216 = vunpack.c.h.b16 %v1066
    %v1217 = vunpack.c.l.b16 %v1067
    %v1218 = vunpack.c.h.b16 %v1067
    %v1219 = vunpack.c.l.b16 %v1068
    %v1220 = vunpack.c.h.b16 %v1068
    %v1221 = vpack.c.b16 %v1213, %v1205
    %v1222 = vpack.c.b16 %v1214, %v1206
    %v1223 = vpack.c.b16 %v1215, %v1207
    %v1224 = vpack.c.b16 %v1216, %v1208
    %v1225 = vpack.c.b16 %v1217, %v1209
    %v1226 = vpack.c.b16 %v1218, %v1210
    %v1227 = vpack.c.b16 %v1219, %v1211
    %v1228 = vpack.c.b16 %v1220, %v1212
    %v1365 = vunpack.c.l.b16 %v1069
    %v1366 = vunpack.c.l.b16 %v1070
    %v1367 = vunpack.c.l.b16 %v1071
    %v1368 = vunpack.c.l.b16 %v1072
    %v1369 = vunpack.c.l.b16 %v1073
    %v1370 = vunpack.c.l.b16 %v1074
    %v1371 = vunpack.c.l.b16 %v1075
    %v1372 = vunpack.c.l.b16 %v1076
    %v1373 = vunpack.c.l.b16 %v1077
    %v1374 = vunpack.c.l.b16 %v1078
    %v1375 = vunpack.c.l.b16 %v1079
    %v1376 = vunpack.c.l.b16 %v1080
    %v1377 = vunpack.c.l.b16 %v1081
    %v1378 = vunpack.c.l.b16 %v1082
    %v1379 = vunpack.c.l.b16 %v1083
    %v1380 = vunpack.c.l.b16 %v1084
    %v1381 = vunpack.c.l.b16 %v1085
    %v1382 = vunpack.c.l.b16 %v1086
    %v1383 = vunpack.c.l.b16 %v1087
    %v1384 = vunpack.c.l.b16 %v1088
    %v1385 = vunpack.c.l.b16 %v1089
    %v1386 = vunpack.c.l.b16 %v1090
    %v1387 = vunpack.c.l.b16 %v1091
    %v1388 = vunpack.c.l.b16 %v1092
    %v1389 = vunpack.c.l.b16 %v1093
    %v1390 = vunpack.c.l.b16 %v1094
    %v1391 = vunpack.c.l.b16 %v1095
    %v1392 = vunpack.c.l.b16 %v1096
    %v1393 = vunpack.c.l.b16 %v1097
    %v1394 = vunpack.c.l.b16 %v1098
    %v1395 = vunpack.c.l.b16 %v1099
    %v1396 = vunpack.c.l.b16 %v1100
    %v1397 = vunpack.c.l.b16 %v1101
    %v1398 = vunpack.c.l.b16 %v1102
    %v1399 = vunpack.c.l.b16 %v1103
    %v1400 = vunpack.c.l.b16 %v1104
    %v1401 = vunpack.c.l.b16 %v1105
    %v1402 = vunpack.c.l.b16 %v1106
    %v1403 = vunpack.c.l.b16 %v1107
    %v1404 = vunpack.c.l.b16 %v1108
    %v1405 = vunpack.c.l.b16 %v1109
    %v1406 = vunpack.c.l.b16 %v1110
    %v1407 = vunpack.c.l.b16 %v1111
    %v1408 = vunpack.c.l.b16 %v1112
    %v1409 = vunpack.c.l.b16 %v1113
    %v1410 = vunpack.c.l.b16 %v1114
    %v1411 = vunpack.c.l.b16 %v1115
    %v1412 = vunpack.c.l.b16 %v1116
    %v1413 = vunpack.c.l.b16 %v1117
    %v1414 = vunpack.c.l.b16 %v1118
    %v1415 = vunpack.c.l.b16 %v1119
    %v1416 = vunpack.c.l.b16 %v1120
    %v1417 = vunpack.c.l.b16 %v1121
    %v1418 = vunpack.c.l.b16 %v1122
    %v1419 = vunpack.c.l.b16 %v1123
    %v1420 = vunpack.c.l.b16 %v1124
    %v1421 = vunpack.c.l.b16 %v1125
    %v1422 = vunpack.c.l.b16 %v1126
    %v1423 = vunpack.c.l.b16 %v1127
    %v1424 = vunpack.c.l.b16 %v1128
    %v1425 = vunpack.c.l.b16 %v1129
    %v1426 = vunpack.c.l.b16 %v1130
    %v1427 = vunpack.c.l.b16 %v1131
    %v1428 = vunpack.c.l.b16 %v1132
    %v1429 = vunpack.c.l.b16 %v1133
    %v1430 = vunpack.c.l.b16 %v1134
    %v1431 = vunpack.c.l.b16 %v1135
    %v1432 = vunpack.c.l.b16 %v1136
    %v1433 = vunpack.c.l.b16 %v1137
    %v1434 = vunpack.c.l.b16 %v1138
    %v1435 = vunpack.c.l.b16 %v1139
    %v1436 = vunpack.c.l.b16 %v1140
    %v1437 = vunpack.c.l.b16 %v1141
    %v1438 = vunpack.c.l.b16 %v1142
    %v1439 = vunpack.c.l.b16 %v1143
    %v1440 = vunpack.c.l.b16 %v1144
    %v1441 = vunpack.c.l.b16 %v1145
    %v1442 = vunpack.c.l.b16 %v1146
    %v1443 = vunpack.c.l.b16 %v1147
    %v1444 = vunpack.c.l.b16 %v1148
    %v1445 = vunpack.c.l.b16 %v1149
    %v1446 = vunpack.c.l.b16 %v1150
    %v1447 = vunpack.c.l.b16 %v1151
    %v1448 = vunpack.c.l.b16 %v1152
    %v1449 = vunpack.c.l.b16 %v1153
    %v1450 = vunpack.c.l.b16 %v1154
    %v1451 = vunpack.c.l.b16 %v1155
    %v1452 = vunpack.c.l.b16 %v1156
    %v1453 = vunpack.c.l.b16 %v1157
    %v1454 = vunpack.c.l.b16 %v1158
    %v1455 = vunpack.c.l.b16 %v1159
    %v1456 = vunpack.c.l.b16 %v1160
    %v1457 = vunpack.c.l.b16 %v1161
    %v1458 = vunpack.c.l.b16 %v1162
    %v1459 = vunpack.c.l.b16 %v1163
    %v1460 = vunpack.c.l.b16 %v1164
    %v1461 = vunpack.c.l.b16 %v1165
    %v1462 = vunpack.c.l.b16 %v1166
    %v1463 = vunpack.c.l.b16 %v1167
    %v1464 = vunpack.c.l.b16 %v1168
    %v1465 = vunpack.c.l.b16 %v1169
    %v1466 = vunpack.c.l.b16 %v1170
    %v1467 = vunpack.c.l.b16 %v1171
    %v1468 = vunpack.c.l.b16 %v1172
    %v1469 = vunpack.c.l.b16 %v1173
    %v1470 = vunpack.c.l.b16 %v1174
    %v1471 = vunpack.c.l.b16 %v1175
    %v1472 = vunpack.c.l.b16 %v1176
    %v1473 = vunpack.c.l.b16 %v1177
    %v1474 = vunpack.c.l.b16 %v1178
    %v1475 = vunpack.c.l.b16 %v1179
    %v1476 = vunpack.c.l.b16 %v1180
    %v1477 = vunpack.c.l.b16 %v1181
    %v1478 = vunpack.c.l.b16 %v1182
    %v1479 = vunpack.c.l.b16 %v1183
    %v1480 = vunpack.c.l.b16 %v1184
    %v1481 = vunpack.c.l.b16 %v1185
    %v1482 = vunpack.c.l.b16 %v1186
    %v1483 = vunpack.c.l.b16 %v1187
    %v1484 = vunpack.c.l.b16 %v1188
    %v1485 = vunpack.c.l.b16 %v1189
    %v1486 = vunpack.c.l.b16 %v1190
    %v1487 = vunpack.c.l.b16 %v1191
    %v1488 = vunpack.c.l.b16 %v1192
    %v1489 = vunpack.c.l.b16 %v1193
    %v1490 = vunpack.c.l.b16 %v1194
    %v1491 = vunpack.c.l.b16 %v1195
    %v1492 = vunpack.c.l.b16 %v1196
    %v1493 = vpack.c.b16 %v1366, %v1365
    %v1494 = vpack.c.b16 %v1368, %v1367
    %v1495 = vpack.c.b16 %v1370, %v1369
    %v1496 = vpack.c.b16 %v1372, %v1371
    %v1497 = vpack.c.b16 %v1374, %v1373
    %v1498 = vpack.c.b16 %v1376, %v1375
    %v1499 = vpack.c.b16 %v1378, %v1377
    %v1500 = vpack.c.b16 %v1380, %v1379
    %v1501 = vpack.c.b16 %v1382, %v1381
    %v1502 = vpack.c.b16 %v1384, %v1383
    %v1503 = vpack.c.b16 %v1386, %v1385
    %v1504 = vpack.c.b16 %v1388, %v1387
    %v1505 = vpack.c.b16 %v1390, %v1389
    %v1506 = vpack.c.b16 %v1392, %v1391
    %v1507 = vpack.c.b16 %v1394, %v1393
    %v1508 = vpack.c.b16 %v1396, %v1395
    %v1509 = vpack.c.b16 %v1398, %v1397
    %v1510 = vpack.c.b16 %v1400, %v1399
    %v1511 = vpack.c.b16 %v1402, %v1401
    %v1512 = vpack.c.b16 %v1404, %v1403
    %v1513 = vpack.c.b16 %v1406, %v1405
    %v1514 = vpack.c.b16 %v1408, %v1407
    %v1515 = vpack.c.b16 %v1410, %v1409
    %v1516 = vpack.c.b16 %v1412, %v1411
    %v1517 = vpack.c.b16 %v1414, %v1413
    %v1518 = vpack.c.b16 %v1416, %v1415
    %v1519 = vpack.c.b16 %v1418, %v1417
    %v1520 = vpack.c.b16 %v1420, %v1419
    %v1521 = vpack.c.b16 %v1422, %v1421
    %v1522 = vpack.c.b16 %v1424, %v1423
    %v1523 = vpack.c.b16 %v1426, %v1425
    %v1524 = vpack.c.b16 %v1428, %v1427
    %v1525 = vpack.c.b16 %v1430, %v1429
    %v1526 = vpack.c.b16 %v1432, %v1431
    %v1527 = vpack.c.b16 %v1434, %v1433
    %v1528 = vpack.c.b16 %v1436, %v1435
    %v1529 = vpack.c.b16 %v1438, %v1437
    %v1530 = vpack.c.b16 %v1440, %v1439
    %v1531 = vpack.c.b16 %v1442, %v1441
    %v1532 = vpack.c.b16 %v1444, %v1443
    %v1533 = vpack.c.b16 %v1446, %v1445
    %v1534 = vpack.c.b16 %v1448, %v1447
    %v1535 = vpack.c.b16 %v1450, %v1449
    %v1536 = vpack.c.b16 %v1452, %v1451
    %v1537 = vpack.c.b16 %v1454, %v1453
    %v1538 = vpack.c.b16 %v1456, %v1455
    %v1539 = vpack.c.b16 %v1458, %v1457
    %v1540 = vpack.c.b16 %v1460, %v1459
    %v1541 = vpack.c.b16 %v1462, %v1461
    %v1542 = vpack.c.b16 %v1464, %v1463
    %v1543 = vpack.c.b16 %v1466, %v1465
    %v1544 = vpack.c.b16 %v1468, %v1467
    %v1545 = vpack.c.b16 %v1470, %v1469
    %v1546 = vpack.c.b16 %v1472, %v1471
    %v1547 = vpack.c.b16 %v1474, %v1473
    %v1548 = vpack.c.b16 %v1476, %v1475
    %v1549 = vpack.c.b16 %v1478, %v1477
    %v1550 = vpack.c.b16 %v1480, %v1479
    %v1551 = vpack.c.b16 %v1482, %v1481
    %v1552 = vpack.c.b16 %v1484, %v1483
    %v1553 = vpack.c.b16 %v1486, %v1485
    %v1554 = vpack.c.b16 %v1488, %v1487
    %v1555 = vpack.c.b16 %v1490, %v1489
    %v1556 = vpack.c.b16 %v1492, %v1491
    %1621 = vmatpush.bf16.msra.mxu0 %v1500
    %1622 = vmatpush.bf16.msra.mxu0 %v1499
    %1623 = vmatpush.bf16.msra.mxu0 %v1498
    %1624 = vmatpush.bf16.msra.mxu0 %v1497
    %1625 = vmatpush.bf16.msra.mxu0 %v1496
    %1626 = vmatpush.bf16.msra.mxu0 %v1495
    %1627 = vmatpush.bf16.msra.mxu0 %v1494
    %1628 = vmatpush.bf16.msra.mxu0 %v1493
    %1629 = vmatmul.bf16.gmra.mxu0 %v1221
    %v1630 = vpop.f32.mrf.mxu0
    %v1631 = vadd.f32 0.0, %v1630
    %v1632 = vpop.f32.mrf.mxu0
    %v1633 = vadd.f32 0.0, %v1632
    %1634 = vdwg.mxu0
    %1635 = vmatpush.bf16.msra.mxu0 %v1508
    %1636 = vmatpush.bf16.msra.mxu0 %v1507
    %1637 = vmatpush.bf16.msra.mxu0 %v1506
    %1638 = vmatpush.bf16.msra.mxu0 %v1505
    %1639 = vmatpush.bf16.msra.mxu0 %v1504
    %1640 = vmatpush.bf16.msra.mxu0 %v1503
    %1641 = vmatpush.bf16.msra.mxu0 %v1502
    %1642 = vmatpush.bf16.msra.mxu0 %v1501
    %1643 = vmatmul.bf16.gmra.mxu0 %v1222
    %v1644 = vpop.f32.mrf.mxu0
    %v1645 = vadd.f32 %v1631, %v1644
    %v1646 = vpop.f32.mrf.mxu0
    %v1647 = vadd.f32 %v1633, %v1646
    %1648 = vdwg.mxu0
    %1649 = vmatpush.bf16.msra.mxu0 %v1516
    %1650 = vmatpush.bf16.msra.mxu0 %v1515
    %1651 = vmatpush.bf16.msra.mxu0 %v1514
    %1652 = vmatpush.bf16.msra.mxu0 %v1513
    %1653 = vmatpush.bf16.msra.mxu0 %v1512
    %1654 = vmatpush.bf16.msra.mxu0 %v1511
    %1655 = vmatpush.bf16.msra.mxu0 %v1510
    %1656 = vmatpush.bf16.msra.mxu0 %v1509
    %1657 = vmatmul.bf16.gmra.mxu0 %v1223
    %v1658 = vpop.f32.mrf.mxu0
    %v1659 = vadd.f32 %v1645, %v1658
    %v1660 = vpop.f32.mrf.mxu0
    %v1661 = vadd.f32 %v1647, %v1660
    %1662 = vdwg.mxu0
    %1663 = vmatpush.bf16.msra.mxu0 %v1524
    %1664 = vmatpush.bf16.msra.mxu0 %v1523
    %1665 = vmatpush.bf16.msra.mxu0 %v1522
    %1666 = vmatpush.bf16.msra.mxu0 %v1521
    %1667 = vmatpush.bf16.msra.mxu0 %v1520
    %1668 = vmatpush.bf16.msra.mxu0 %v1519
    %1669 = vmatpush.bf16.msra.mxu0 %v1518
    %1670 = vmatpush.bf16.msra.mxu0 %v1517
    %1671 = vmatmul.bf16.gmra.mxu0 %v1224
    %v1672 = vpop.f32.mrf.mxu0
    %v1673 = vadd.f32 %v1659, %v1672
    %v1674 = vpop.f32.mrf.mxu0
    %v1675 = vadd.f32 %v1661, %v1674
    %1676 = vdwg.mxu0
    %1677 = vmatpush.bf16.msra.mxu0 %v1532
    %1678 = vmatpush.bf16.msra.mxu0 %v1531
    %1679 = vmatpush.bf16.msra.mxu0 %v1530
    %1680 = vmatpush.bf16.msra.mxu0 %v1529
    %1681 = vmatpush.bf16.msra.mxu0 %v1528
    %1682 = vmatpush.bf16.msra.mxu0 %v1527
    %1683 = vmatpush.bf16.msra.mxu0 %v1526
    %1684 = vmatpush.bf16.msra.mxu0 %v1525
    %1685 = vmatmul.bf16.gmra.mxu0 %v1225
    %v1686 = vpop.f32.mrf.mxu0
    %v1687 = vadd.f32 %v1673, %v1686
    %v1688 = vpop.f32.mrf.mxu0
    %v1689 = vadd.f32 %v1675, %v1688
    %1690 = vdwg.mxu0
    %1691 = vmatpush.bf16.msra.mxu0 %v1540
    %1692 = vmatpush.bf16.msra.mxu0 %v1539
    %1693 = vmatpush.bf16.msra.mxu0 %v1538
    %1694 = vmatpush.bf16.msra.mxu0 %v1537
    %1695 = vmatpush.bf16.msra.mxu0 %v1536
    %1696 = vmatpush.bf16.msra.mxu0 %v1535
    %1697 = vmatpush.bf16.msra.mxu0 %v1534
    %1698 = vmatpush.bf16.msra.mxu0 %v1533
    %1699 = vmatmul.bf16.gmra.mxu0 %v1226
    %v1700 = vpop.f32.mrf.mxu0
    %v1701 = vadd.f32 %v1687, %v1700
    %v1702 = vpop.f32.mrf.mxu0
    %v1703 = vadd.f32 %v1689, %v1702
    %1704 = vdwg.mxu0
    %1705 = vmatpush.bf16.msra.mxu0 %v1548
    %1706 = vmatpush.bf16.msra.mxu0 %v1547
    %1707 = vmatpush.bf16.msra.mxu0 %v1546
    %1708 = vmatpush.bf16.msra.mxu0 %v1545
    %1709 = vmatpush.bf16.msra.mxu0 %v1544
    %1710 = vmatpush.bf16.msra.mxu0 %v1543
    %1711 = vmatpush.bf16.msra.mxu0 %v1542
    %1712 = vmatpush.bf16.msra.mxu0 %v1541
    %1713 = vmatmul.bf16.gmra.mxu0 %v1227
    %v1714 = vpop.f32.mrf.mxu0
    %v1715 = vadd.f32 %v1701, %v1714
    %v1716 = vpop.f32.mrf.mxu0
    %v1717 = vadd.f32 %v1703, %v1716
    %1718 = vdwg.mxu0
    %1719 = vmatpush.bf16.msra.mxu0 %v1556
    %1720 = vmatpush.bf16.msra.mxu0 %v1555
    %1721 = vmatpush.bf16.msra.mxu0 %v1554
    %1722 = vmatpush.bf16.msra.mxu0 %v1553
    %1723 = vmatpush.bf16.msra.mxu0 %v1552
    %1724 = vmatpush.bf16.msra.mxu0 %v1551
    %1725 = vmatpush.bf16.msra.mxu0 %v1550
    %1726 = vmatpush.bf16.msra.mxu0 %v1549
    %1727 = vmatmul.bf16.gmra.mxu0 %v1228
    %v1728 = vpop.f32.mrf.mxu0
    %v1729 = vadd.f32 %v1715, %v1728
    %v1730 = vpop.f32.mrf.mxu0
    %v1731 = vadd.f32 %v1717, %v1730
    %1732 = vdwg.mxu0
    %v1733 = vadd.f32 %v1059, %v1729
    %v1734 = vadd.f32 %v1060, %v1731
    %1735 = vst [vmem:[#allocation3] sm:$0xff] %v1733
    %1736 = vst [vmem:[#allocation3 + $0x8] sm:$0xff] %v1734
    // Predicated region
    $region38: #{tpu_custom_call.1} parent=1 // pred_check
      %p1737 = pneg %p81
    $region39: #{tpu_custom_call.1} parent=1 // pred_check_branch
      %1739 = sbr.rel (%p1737) target = $region41
    $region40: #{tpu_custom_call.1} parent=1 // pred_region
      %v1740 = vld [vmem:[#allocation3] sm:$0xff]
      %v1741 = vld [vmem:[#allocation3 + $0x8] sm:$0xff]
      %v1742 = vld [vmem:[#allocation10] sm:$0xff]
      %v1743 = vld [vmem:[#allocation10 + $0x8] sm:$0xff]
      %v1744 = vadd.f32 %v1740, %v1742
      %v1745 = vadd.f32 %v1741, %v1743
      %1746 = vst [vmem:[#allocation12] sm:$0xff] %v1744
      %1747 = vst [vmem:[#allocation12 + $0x8] sm:$0xff] %v1745
    $region41: #{tpu_custom_call.1} parent=1 // pred_fallthru
      _
    // Predicated region
    $region42: #{tpu_custom_call.1} parent=1 // pred_check
      _
    $region43: #{tpu_custom_call.1} parent=1 // pred_check_branch
      %1749 = sbr.rel (0) target = $region45
    $region44: #{tpu_custom_call.1} parent=1 // pred_region
      %1751 = vsyncadd [#allocation6], 0
      %s1752 = sshll.u32 [#allocation12], 4
      %s1753 = int_to_ptr.vmem [resolvable:$true] %s1752
      %s1754 = sshll.u32 %s4, 4
      %s1755 = int_to_ptr.hbm [resolvable:$true] %s1754
      %1760 = dma.vmem_to_hbm [thread:$0]  %s1753, 256, %s1755, [#allocation6], 128, 128, 8
    $region45: #{tpu_custom_call.1} parent=1 // pred_fallthru
      _
    // Predicated region
    $region46: #{tpu_custom_call.1} parent=1 // pred_check
      _
    $region47: #{tpu_custom_call.1} parent=1 // pred_check_branch
      %1762 = sbr.rel (0) target = $region49
    $region48: #{tpu_custom_call.1} parent=1 // pred_region
      %1764 = dma.done [#allocation6], 256
    $region49: #{tpu_custom_call.1} parent=1 // pred_fallthru
      _
    %1765 = vsyncpa [#allocation5], 1
    %1766 = vsyncpa [#allocation8], 1
    %1767 = vsyncpa [#allocation11], 1
    %1768 = vsyncpa [#allocation6], 1

</llo_original>
